<compile_context>
chip_gen: v5e
topology: v5e:2x2
jax: 0.10.0
libtpu: 0.0.40
codegen_flags: <defaults>
</compile_context>

<pallas_src>
import functools

import jax
import jax.numpy as jnp
from jax.experimental import pallas as pl
from jax.experimental.pallas import tpu as pltpu


# ----------------------------------------------------------------------------
# Pallas kernel: fused matmul + bias + (optional) leaky ReLU
# ----------------------------------------------------------------------------
def _mm_bias_act_kernel(x_ref, w_ref, b_ref, o_ref, *, negative_slope):
    # bf16 x bf16 -> f32 accumulation on the MXU.
    acc = jnp.dot(x_ref[...], w_ref[...], preferred_element_type=jnp.float32)
    acc = acc + b_ref[...]                       # (1, Npad) broadcasts over rows
    if negative_slope is not None:
        acc = jnp.where(acc >= 0, acc, negative_slope * acc)
    o_ref[...] = acc.astype(o_ref.dtype)


_TM = 256  # rows of the im2col matrix per M tile (sweepable; mult of 8)


def matmul_bias_act(x, w, b, *, negative_slope=None,
                    out_dtype=jnp.float32, tm=_TM):
    """x: (M, K) bf16, w: (K, Npad) bf16 (Npad % 128 == 0), b: (1, Npad) f32."""
    M, K = x.shape
    K2, Npad = w.shape
    assert K == K2 and Npad % 128 == 0
    if x.dtype != w.dtype:
        x = x.astype(w.dtype)

    # Single M block when M is small (block == full dim satisfies tiling rules);
    # otherwise tile M and let Pallas double-buffer / pipeline over the grid.
    tm_eff = M if M <= tm else tm
    grid_m = pl.cdiv(M, tm_eff)

    # VMEM budget: 2x (double buffering) of the per-block inputs/outputs.
    in_bytes = jnp.dtype(w.dtype).itemsize
    out_bytes = jnp.dtype(out_dtype).itemsize
    vmem_need = 2 * (tm_eff * K * in_bytes + K * Npad * in_bytes
                     + Npad * 4 + tm_eff * Npad * out_bytes)
    vmem_limit = int(min(max(vmem_need + (4 << 20), 16 << 20), 48 << 20))

    kernel = functools.partial(_mm_bias_act_kernel,
                               negative_slope=negative_slope)
    return pl.pallas_call(
        kernel,
        out_shape=jax.ShapeDtypeStruct((M, Npad), out_dtype),
        grid=(grid_m,),
        in_specs=[
            pl.BlockSpec((tm_eff, K), lambda i: (i, 0)),
            pl.BlockSpec((K, Npad), lambda i: (0, 0)),   # weights stay resident
            pl.BlockSpec((1, Npad), lambda i: (0, 0)),
        ],
        out_specs=pl.BlockSpec((tm_eff, Npad), lambda i: (i, 0)),
        compiler_params=pltpu.CompilerParams(
            dimension_semantics=("parallel",),           # megacore on v7x
            vmem_limit_bytes=vmem_limit,
        ),
    )(x, w, b)


# ----------------------------------------------------------------------------
# im2col in NHWC order (pure slicing/concat glue; K ordered as (ki, kj, ci))
# ----------------------------------------------------------------------------
def im2col_nhwc(x, c_real, k, stride, pad):
    # x: (N, H, W, Cstore) possibly channel-padded; only the first c_real
    # channels are real (padded channels are exact zeros and are dropped here).
    N, H, W, _ = x.shape
    x = x[..., :c_real]
    xp = jnp.pad(x, ((0, 0), (pad, pad), (pad, pad), (0, 0)))
    Ho = (H + 2 * pad - k) // stride + 1
    Wo = (W + 2 * pad - k) // stride + 1
    patches = []
    for i in range(k):
        for j in range(k):
            patches.append(
                xp[:, i:i + stride * Ho:stride, j:j + stride * Wo:stride, :])
    cols = jnp.concatenate(patches, axis=-1)          # (N, Ho, Wo, k*k*c_real)
    return cols.reshape(N * Ho * Wo, k * k * c_real), Ho, Wo


# ----------------------------------------------------------------------------
# One-time parameter preparation (hoisted out of the forward pass)
# ----------------------------------------------------------------------------
def _round_up(v, m):
    return ((v + m - 1) // m) * m


def prepare_critic_params(params):
    prepped = {'conv': []}
    for idx in range(1, 5):
        w = params[f'w{idx}']                          # (Cout, Cin, k, k) OIHW
        b = params[f'b{idx}']
        cout, cin, k, _ = w.shape
        npad = _round_up(cout, 128)                    # lane-dense output width
        wm = jnp.transpose(w, (2, 3, 1, 0)).reshape(k * k * cin, cout)
        wm = jnp.pad(wm, ((0, 0), (0, npad - cout))).astype(jnp.bfloat16)
        bm = jnp.pad(b, (0, npad - cout)).reshape(1, npad).astype(jnp.float32)
        prepped['conv'].append((wm, bm))
    wfc = params['wfc']                                # (1, feat)
    wfc_m = jnp.pad(wfc.T, ((0, 0), (0, 127))).astype(jnp.bfloat16)  # (feat,128)
    bfc_m = jnp.pad(params['bfc'], (0, 127)).reshape(1, 128).astype(jnp.float32)
    prepped['fc'] = (wfc_m, bfc_m)
    return prepped


# ----------------------------------------------------------------------------
# Critic forward (matches the PyTorch module semantics)
# ----------------------------------------------------------------------------
def critic_forward(x, prep, image_size, channel_size):
    # x: (N, Cin, H, W) f32, PyTorch layout. Convert to NHWC bf16 once.
    N = x.shape[0]
    x = jnp.transpose(x, (0, 2, 3, 1)).astype(jnp.bfloat16)
    strides = (2, 2, 2, 1)
    for (wm, bm), stride in zip(prep['conv'], strides):
        c_in = wm.shape[0] // 16                       # k*k = 16
        cols, Ho, Wo = im2col_nhwc(x, c_in, k=4, stride=stride, pad=1)
        y = matmul_bias_act(cols, wm, bm, negative_slope=0.01,
                            out_dtype=jnp.bfloat16)    # (N*Ho*Wo, Cpad)
        x = y.reshape(N, Ho, Wo, y.shape[-1])          # stay NHWC (padded C)

    c4 = channel_size * 8
    feat = (image_size // 8) ** 2 * channel_size * 4
    # torch `.view(-1, feat)` on contiguous NCHW == flat reshape in NCHW order;
    # this is the single place we produce the NCHW ordering.
    x = jnp.transpose(x[..., :c4], (0, 3, 1, 2)).reshape(-1, feat)

    wfc, bfc = prep['fc']
    out = matmul_bias_act(x, wfc, bfc, negative_slope=None,
                          out_dtype=jnp.float32)       # (M2, 128) lane-dense
    return out[:, :1]


# ----------------------------------------------------------------------------
# Pure-JAX f32 reference (lax conv) for correctness checking
# ----------------------------------------------------------------------------
def ref_forward(x, params, image_size, channel_size):
    def conv(x, w, b, stride):
        y = jax.lax.conv_general_dilated(
            x, w, (stride, stride), ((1, 1), (1, 1)),
            dimension_numbers=('NCHW', 'OIHW', 'NCHW'))
        y = y + b[None, :, None, None]
        return jnp.where(y >= 0, y, 0.01 * y)

    x = conv(x, params['w1'], params['b1'], 2)
    x = conv(x, params['w2'], params['b2'], 2)
    x = conv(x, params['w3'], params['b3'], 2)
    x = conv(x, params['w4'], params['b4'], 1)
    feat = (image_size // 8) ** 2 * channel_size * 4
    x = x.reshape(-1, feat)
    return x @ params['wfc'].T + params['bfc']


# ----------------------------------------------------------------------------
if __name__ == "__main__":
    image_size = 16
    image_channel_size = 4
    channel_size = 8          # "channel_size" of the Critic (cs)
    batch = 8                 # even => the .view(-1, feat) re-batching is legal

    cs = channel_size
    key = jax.random.PRNGKey(0)
    keys = jax.random.split(key, 11)

    def init(k, shape, fan_in):
        bound = 1.0 / (fan_in ** 0.5)
        return jax.random.uniform(k, shape, jnp.float32, -bound, bound)

    feat = (image_size // 8) ** 2 * cs * 4
    params = {
        'w1': init(keys[0], (cs, image_channel_size, 4, 4), image_channel_size * 16),
        'b1': init(keys[1], (cs,), image_channel_size * 16),
        'w2': init(keys[2], (cs * 2, cs, 4, 4), cs * 16),
        'b2': init(keys[3], (cs * 2,), cs * 16),
        'w3': init(keys[4], (cs * 4, cs * 2, 4, 4), cs * 2 * 16),
        'b3': init(keys[5], (cs * 4,), cs * 2 * 16),
        'w4': init(keys[6], (cs * 8, cs * 4, 4, 4), cs * 4 * 16),
        'b4': init(keys[7], (cs * 8,), cs * 4 * 16),
        'wfc': init(keys[8], (1, feat), feat),
        'bfc': init(keys[9], (1,), feat),
    }

    x = jax.random.normal(
        keys[10], (batch, image_channel_size, image_size, image_size),
        jnp.float32)

    prep = prepare_critic_params(params)   # hoisted: computed once, not per step
    fwd = jax.jit(functools.partial(
        critic_forward, image_size=image_size, channel_size=channel_size))

    out = jax.block_until_ready(fwd(x, prep))
    ref = ref_forward(x, params, image_size, channel_size)

    assert out.shape == ref.shape, (out.shape, ref.shape)
    max_err = float(jnp.max(jnp.abs(out - ref)))
    # bf16 MXU inputs / bf16 inter-layer activations with f32 accumulation:
    # tolerance relaxed vs the pure-f32 reference.
    assert jnp.allclose(out, ref, atol=5e-2, rtol=5e-2), max_err
    print("KERNEL_OK")
</pallas_src>

<mosaic_0001>
module attributes {stable_mosaic.version = 11 : i64} {
  func.func @_mm_bias_act_kernel(%arg0: i32, %arg1: memref<256x64xbf16, #tpu.memory_space<vmem>>, %arg2: memref<64x128xbf16, #tpu.memory_space<vmem>>, %arg3: memref<1x128xf32, #tpu.memory_space<vmem>>, %arg4: memref<256x128xbf16, #tpu.memory_space<vmem>>) attributes {dimension_semantics = [#tpu.dimension_semantics<parallel>], iteration_bounds = array<i64: 2>, scalar_prefetch = 0 : i64, scratch_operands = 0 : i64, tpu.core_type = #tpu.core_type<tc>, window_params = [{transform_indices = @transform_0, window_bounds = array<i64: 256, 64>}, {pipeline_mode = #tpu.pipeline_mode<synchronous>, transform_indices = @transform_1, window_bounds = array<i64: 64, 128>}, {pipeline_mode = #tpu.pipeline_mode<synchronous>, transform_indices = @transform_2, window_bounds = array<i64: 1, 128>}, {transform_indices = @transform_3, window_bounds = array<i64: 256, 128>}]} {
    %c0 = arith.constant 0 : index
    %c0_0 = arith.constant 0 : index
    %0 = vector.load %arg1[%c0, %c0_0] : memref<256x64xbf16, #tpu.memory_space<vmem>>, vector<256x64xbf16>
    %c0_1 = arith.constant 0 : index
    %c0_2 = arith.constant 0 : index
    %1 = vector.load %arg2[%c0_1, %c0_2] : memref<64x128xbf16, #tpu.memory_space<vmem>>, vector<64x128xbf16>
    %cst = arith.constant dense<0.000000e+00> : vector<256x128xf32>
    %2 = tpu.matmul %0, %1, %cst {dimension_numbers = #tpu.dot_dimension_numbers<[1], [0], [0], [1], [0, 0, 1, 1], [], []>} : vector<256x64xbf16>, vector<64x128xbf16>, vector<256x128xf32> -> vector<256x128xf32>
    %c0_3 = arith.constant 0 : index
    %c0_4 = arith.constant 0 : index
    %3 = vector.load %arg3[%c0_3, %c0_4] : memref<1x128xf32, #tpu.memory_space<vmem>>, vector<1x128xf32>
    %4 = vector.broadcast %3 : vector<1x128xf32> to vector<256x128xf32>
    %5 = arith.addf %2, %4 : vector<256x128xf32>
    %cst_5 = arith.constant 0.000000e+00 : f32
    %6 = vector.broadcast %cst_5 : f32 to vector<256x128xf32>
    %7 = arith.cmpf oge, %5, %6 : vector<256x128xf32>
    %cst_6 = arith.constant 0.00999999977 : f32
    %8 = vector.broadcast %cst_6 : f32 to vector<256x128xf32>
    %9 = arith.mulf %8, %5 : vector<256x128xf32>
    %10 = arith.select %7, %5, %9 : vector<256x128xi1>, vector<256x128xf32>
    %11 = arith.truncf %10 : vector<256x128xf32> to vector<256x128xbf16>
    %c0_7 = arith.constant 0 : index
    %c0_8 = arith.constant 0 : index
    %12 = vector.load %arg4[%c0_7, %c0_8] : memref<256x128xbf16, #tpu.memory_space<vmem>>, vector<256x128xbf16>
    tpu.vector_store %arg4[%c0_7, %c0_8], %11 {strides = array<i32>} : memref<256x128xbf16, #tpu.memory_space<vmem>>, vector<256x128xbf16>,
    return
  }
  func.func @transform_0(%arg0: i32) -> (i32, i32) {
    %c0_i32 = arith.constant 0 : i32
    %c0_i32_0 = arith.constant 0 : i32
    return %arg0, %c0_i32 : i32, i32
  }
  func.func @transform_1(%arg0: i32) -> (i32, i32) {
    %c0_i32 = arith.constant 0 : i32
    %c0_i32_0 = arith.constant 0 : i32
    %c0_i32_1 = arith.constant 0 : i32
    return %c0_i32, %c0_i32_0 : i32, i32
  }
  func.func @transform_2(%arg0: i32) -> (i32, i32) {
    %c0_i32 = arith.constant 0 : i32
    %c0_i32_0 = arith.constant 0 : i32
    %c0_i32_1 = arith.constant 0 : i32
    return %c0_i32, %c0_i32_0 : i32, i32
  }
  func.func @transform_3(%arg0: i32) -> (i32, i32) {
    %c0_i32 = arith.constant 0 : i32
    %c0_i32_0 = arith.constant 0 : i32
    return %arg0, %c0_i32 : i32, i32
  }
}

module attributes {stable_mosaic.version = 11 : i64} {
  func.func @_mm_bias_act_kernel(%arg0: i32, %arg1: memref<128x128xbf16, #tpu.memory_space<vmem>>, %arg2: memref<128x128xbf16, #tpu.memory_space<vmem>>, %arg3: memref<1x128xf32, #tpu.memory_space<vmem>>, %arg4: memref<128x128xbf16, #tpu.memory_space<vmem>>) attributes {dimension_semantics = [#tpu.dimension_semantics<parallel>], iteration_bounds = array<i64: 1>, scalar_prefetch = 0 : i64, scratch_operands = 0 : i64, tpu.core_type = #tpu.core_type<tc>, window_params = [{transform_indices = @transform_0, window_bounds = array<i64: 128, 128>}, {pipeline_mode = #tpu.pipeline_mode<synchronous>, transform_indices = @transform_1, window_bounds = array<i64: 128, 128>}, {pipeline_mode = #tpu.pipeline_mode<synchronous>, transform_indices = @transform_2, window_bounds = array<i64: 1, 128>}, {transform_indices = @transform_3, window_bounds = array<i64: 128, 128>}]} {
    %c0 = arith.constant 0 : index
    %c0_0 = arith.constant 0 : index
    %0 = vector.load %arg1[%c0, %c0_0] : memref<128x128xbf16, #tpu.memory_space<vmem>>, vector<128x128xbf16>
    %c0_1 = arith.constant 0 : index
    %c0_2 = arith.constant 0 : index
    %1 = vector.load %arg2[%c0_1, %c0_2] : memref<128x128xbf16, #tpu.memory_space<vmem>>, vector<128x128xbf16>
    %cst = arith.constant dense<0.000000e+00> : vector<128x128xf32>
    %2 = tpu.matmul %0, %1, %cst {dimension_numbers = #tpu.dot_dimension_numbers<[1], [0], [0], [1], [0, 0, 1, 1], [], []>} : vector<128x128xbf16>, vector<128x128xbf16>, vector<128x128xf32> -> vector<128x128xf32>
    %c0_3 = arith.constant 0 : index
    %c0_4 = arith.constant 0 : index
    %3 = vector.load %arg3[%c0_3, %c0_4] : memref<1x128xf32, #tpu.memory_space<vmem>>, vector<1x128xf32>
    %4 = vector.broadcast %3 : vector<1x128xf32> to vector<128x128xf32>
    %5 = arith.addf %2, %4 : vector<128x128xf32>
    %cst_5 = arith.constant 0.000000e+00 : f32
    %6 = vector.broadcast %cst_5 : f32 to vector<128x128xf32>
    %7 = arith.cmpf oge, %5, %6 : vector<128x128xf32>
    %cst_6 = arith.constant 0.00999999977 : f32
    %8 = vector.broadcast %cst_6 : f32 to vector<128x128xf32>
    %9 = arith.mulf %8, %5 : vector<128x128xf32>
    %10 = arith.select %7, %5, %9 : vector<128x128xi1>, vector<128x128xf32>
    %11 = arith.truncf %10 : vector<128x128xf32> to vector<128x128xbf16>
    %c0_7 = arith.constant 0 : index
    %c0_8 = arith.constant 0 : index
    %12 = vector.load %arg4[%c0_7, %c0_8] : memref<128x128xbf16, #tpu.memory_space<vmem>>, vector<128x128xbf16>
    tpu.vector_store %arg4[%c0_7, %c0_8], %11 {strides = array<i32>} : memref<128x128xbf16, #tpu.memory_space<vmem>>, vector<128x128xbf16>,
    return
  }
  func.func @transform_0(%arg0: i32) -> (i32, i32) {
    %c0_i32 = arith.constant 0 : i32
    %c0_i32_0 = arith.constant 0 : i32
    return %arg0, %c0_i32 : i32, i32
  }
  func.func @transform_1(%arg0: i32) -> (i32, i32) {
    %c0_i32 = arith.constant 0 : i32
    %c0_i32_0 = arith.constant 0 : i32
    %c0_i32_1 = arith.constant 0 : i32
    return %c0_i32, %c0_i32_0 : i32, i32
  }
  func.func @transform_2(%arg0: i32) -> (i32, i32) {
    %c0_i32 = arith.constant 0 : i32
    %c0_i32_0 = arith.constant 0 : i32
    %c0_i32_1 = arith.constant 0 : i32
    return %c0_i32, %c0_i32_0 : i32, i32
  }
  func.func @transform_3(%arg0: i32) -> (i32, i32) {
    %c0_i32 = arith.constant 0 : i32
    %c0_i32_0 = arith.constant 0 : i32
    return %arg0, %c0_i32 : i32, i32
  }
}

module attributes {stable_mosaic.version = 11 : i64} {
  func.func @_mm_bias_act_kernel(%arg0: i32, %arg1: memref<32x256xbf16, #tpu.memory_space<vmem>>, %arg2: memref<256x128xbf16, #tpu.memory_space<vmem>>, %arg3: memref<1x128xf32, #tpu.memory_space<vmem>>, %arg4: memref<32x128xbf16, #tpu.memory_space<vmem>>) attributes {dimension_semantics = [#tpu.dimension_semantics<parallel>], iteration_bounds = array<i64: 1>, scalar_prefetch = 0 : i64, scratch_operands = 0 : i64, tpu.core_type = #tpu.core_type<tc>, window_params = [{transform_indices = @transform_0, window_bounds = array<i64: 32, 256>}, {pipeline_mode = #tpu.pipeline_mode<synchronous>, transform_indices = @transform_1, window_bounds = array<i64: 256, 128>}, {pipeline_mode = #tpu.pipeline_mode<synchronous>, transform_indices = @transform_2, window_bounds = array<i64: 1, 128>}, {transform_indices = @transform_3, window_bounds = array<i64: 32, 128>}]} {
    %c0 = arith.constant 0 : index
    %c0_0 = arith.constant 0 : index
    %0 = vector.load %arg1[%c0, %c0_0] : memref<32x256xbf16, #tpu.memory_space<vmem>>, vector<32x256xbf16>
    %c0_1 = arith.constant 0 : index
    %c0_2 = arith.constant 0 : index
    %1 = vector.load %arg2[%c0_1, %c0_2] : memref<256x128xbf16, #tpu.memory_space<vmem>>, vector<256x128xbf16>
    %cst = arith.constant dense<0.000000e+00> : vector<32x128xf32>
    %2 = tpu.matmul %0, %1, %cst {dimension_numbers = #tpu.dot_dimension_numbers<[1], [0], [0], [1], [0, 0, 1, 1], [], []>} : vector<32x256xbf16>, vector<256x128xbf16>, vector<32x128xf32> -> vector<32x128xf32>
    %c0_3 = arith.constant 0 : index
    %c0_4 = arith.constant 0 : index
    %3 = vector.load %arg3[%c0_3, %c0_4] : memref<1x128xf32, #tpu.memory_space<vmem>>, vector<1x128xf32>
    %4 = vector.broadcast %3 : vector<1x128xf32> to vector<32x128xf32>
    %5 = arith.addf %2, %4 : vector<32x128xf32>
    %cst_5 = arith.constant 0.000000e+00 : f32
    %6 = vector.broadcast %cst_5 : f32 to vector<32x128xf32>
    %7 = arith.cmpf oge, %5, %6 : vector<32x128xf32>
    %cst_6 = arith.constant 0.00999999977 : f32
    %8 = vector.broadcast %cst_6 : f32 to vector<32x128xf32>
    %9 = arith.mulf %8, %5 : vector<32x128xf32>
    %10 = arith.select %7, %5, %9 : vector<32x128xi1>, vector<32x128xf32>
    %11 = arith.truncf %10 : vector<32x128xf32> to vector<32x128xbf16>
    %c0_7 = arith.constant 0 : index
    %c0_8 = arith.constant 0 : index
    %12 = vector.load %arg4[%c0_7, %c0_8] : memref<32x128xbf16, #tpu.memory_space<vmem>>, vector<32x128xbf16>
    tpu.vector_store %arg4[%c0_7, %c0_8], %11 {strides = array<i32>} : memref<32x128xbf16, #tpu.memory_space<vmem>>, vector<32x128xbf16>,
    return
  }
  func.func @transform_0(%arg0: i32) -> (i32, i32) {
    %c0_i32 = arith.constant 0 : i32
    %c0_i32_0 = arith.constant 0 : i32
    return %arg0, %c0_i32 : i32, i32
  }
  func.func @transform_1(%arg0: i32) -> (i32, i32) {
    %c0_i32 = arith.constant 0 : i32
    %c0_i32_0 = arith.constant 0 : i32
    %c0_i32_1 = arith.constant 0 : i32
    return %c0_i32, %c0_i32_0 : i32, i32
  }
  func.func @transform_2(%arg0: i32) -> (i32, i32) {
    %c0_i32 = arith.constant 0 : i32
    %c0_i32_0 = arith.constant 0 : i32
    %c0_i32_1 = arith.constant 0 : i32
    return %c0_i32, %c0_i32_0 : i32, i32
  }
  func.func @transform_3(%arg0: i32) -> (i32, i32) {
    %c0_i32 = arith.constant 0 : i32
    %c0_i32_0 = arith.constant 0 : i32
    return %arg0, %c0_i32 : i32, i32
  }
}

module attributes {stable_mosaic.version = 11 : i64} {
  func.func @_mm_bias_act_kernel(%arg0: i32, %arg1: memref<8x512xbf16, #tpu.memory_space<vmem>>, %arg2: memref<512x128xbf16, #tpu.memory_space<vmem>>, %arg3: memref<1x128xf32, #tpu.memory_space<vmem>>, %arg4: memref<8x128xbf16, #tpu.memory_space<vmem>>) attributes {dimension_semantics = [#tpu.dimension_semantics<parallel>], iteration_bounds = array<i64: 1>, scalar_prefetch = 0 : i64, scratch_operands = 0 : i64, tpu.core_type = #tpu.core_type<tc>, window_params = [{transform_indices = @transform_0, window_bounds = array<i64: 8, 512>}, {pipeline_mode = #tpu.pipeline_mode<synchronous>, transform_indices = @transform_1, window_bounds = array<i64: 512, 128>}, {pipeline_mode = #tpu.pipeline_mode<synchronous>, transform_indices = @transform_2, window_bounds = array<i64: 1, 128>}, {transform_indices = @transform_3, window_bounds = array<i64: 8, 128>}]} {
    %c0 = arith.constant 0 : index
    %c0_0 = arith.constant 0 : index
    %0 = vector.load %arg1[%c0, %c0_0] : memref<8x512xbf16, #tpu.memory_space<vmem>>, vector<8x512xbf16>
    %c0_1 = arith.constant 0 : index
    %c0_2 = arith.constant 0 : index
    %1 = vector.load %arg2[%c0_1, %c0_2] : memref<512x128xbf16, #tpu.memory_space<vmem>>, vector<512x128xbf16>
    %cst = arith.constant dense<0.000000e+00> : vector<8x128xf32>
    %2 = tpu.matmul %0, %1, %cst {dimension_numbers = #tpu.dot_dimension_numbers<[1], [0], [0], [1], [0, 0, 1, 1], [], []>} : vector<8x512xbf16>, vector<512x128xbf16>, vector<8x128xf32> -> vector<8x128xf32>
    %c0_3 = arith.constant 0 : index
    %c0_4 = arith.constant 0 : index
    %3 = vector.load %arg3[%c0_3, %c0_4] : memref<1x128xf32, #tpu.memory_space<vmem>>, vector<1x128xf32>
    %4 = vector.broadcast %3 : vector<1x128xf32> to vector<8x128xf32>
    %5 = arith.addf %2, %4 : vector<8x128xf32>
    %cst_5 = arith.constant 0.000000e+00 : f32
    %6 = vector.broadcast %cst_5 : f32 to vector<8x128xf32>
    %7 = arith.cmpf oge, %5, %6 : vector<8x128xf32>
    %cst_6 = arith.constant 0.00999999977 : f32
    %8 = vector.broadcast %cst_6 : f32 to vector<8x128xf32>
    %9 = arith.mulf %8, %5 : vector<8x128xf32>
    %10 = arith.select %7, %5, %9 : vector<8x128xi1>, vector<8x128xf32>
    %11 = arith.truncf %10 : vector<8x128xf32> to vector<8x128xbf16>
    %c0_7 = arith.constant 0 : index
    %c0_8 = arith.constant 0 : index
    %12 = vector.load %arg4[%c0_7, %c0_8] : memref<8x128xbf16, #tpu.memory_space<vmem>>, vector<8x128xbf16>
    tpu.vector_store %arg4[%c0_7, %c0_8], %11 {strides = array<i32>} : memref<8x128xbf16, #tpu.memory_space<vmem>>, vector<8x128xbf16>,
    return
  }
  func.func @transform_0(%arg0: i32) -> (i32, i32) {
    %c0_i32 = arith.constant 0 : i32
    %c0_i32_0 = arith.constant 0 : i32
    return %arg0, %c0_i32 : i32, i32
  }
  func.func @transform_1(%arg0: i32) -> (i32, i32) {
    %c0_i32 = arith.constant 0 : i32
    %c0_i32_0 = arith.constant 0 : i32
    %c0_i32_1 = arith.constant 0 : i32
    return %c0_i32, %c0_i32_0 : i32, i32
  }
  func.func @transform_2(%arg0: i32) -> (i32, i32) {
    %c0_i32 = arith.constant 0 : i32
    %c0_i32_0 = arith.constant 0 : i32
    %c0_i32_1 = arith.constant 0 : i32
    return %c0_i32, %c0_i32_0 : i32, i32
  }
  func.func @transform_3(%arg0: i32) -> (i32, i32) {
    %c0_i32 = arith.constant 0 : i32
    %c0_i32_0 = arith.constant 0 : i32
    return %arg0, %c0_i32 : i32, i32
  }
}

module attributes {stable_mosaic.version = 11 : i64} {
  func.func @_mm_bias_act_kernel(%arg0: i32, %arg1: memref<4x128xbf16, #tpu.memory_space<vmem>>, %arg2: memref<128x128xbf16, #tpu.memory_space<vmem>>, %arg3: memref<1x128xf32, #tpu.memory_space<vmem>>, %arg4: memref<4x128xf32, #tpu.memory_space<vmem>>) attributes {dimension_semantics = [#tpu.dimension_semantics<parallel>], iteration_bounds = array<i64: 1>, scalar_prefetch = 0 : i64, scratch_operands = 0 : i64, tpu.core_type = #tpu.core_type<tc>, window_params = [{transform_indices = @transform_0, window_bounds = array<i64: 4, 128>}, {pipeline_mode = #tpu.pipeline_mode<synchronous>, transform_indices = @transform_1, window_bounds = array<i64: 128, 128>}, {pipeline_mode = #tpu.pipeline_mode<synchronous>, transform_indices = @transform_2, window_bounds = array<i64: 1, 128>}, {transform_indices = @transform_3, window_bounds = array<i64: 4, 128>}]} {
    %c0 = arith.constant 0 : index
    %c0_0 = arith.constant 0 : index
    %0 = vector.load %arg1[%c0, %c0_0] : memref<4x128xbf16, #tpu.memory_space<vmem>>, vector<4x128xbf16>
    %c0_1 = arith.constant 0 : index
    %c0_2 = arith.constant 0 : index
    %1 = vector.load %arg2[%c0_1, %c0_2] : memref<128x128xbf16, #tpu.memory_space<vmem>>, vector<128x128xbf16>
    %cst = arith.constant dense<0.000000e+00> : vector<4x128xf32>
    %2 = tpu.matmul %0, %1, %cst {dimension_numbers = #tpu.dot_dimension_numbers<[1], [0], [0], [1], [0, 0, 1, 1], [], []>} : vector<4x128xbf16>, vector<128x128xbf16>, vector<4x128xf32> -> vector<4x128xf32>
    %c0_3 = arith.constant 0 : index
    %c0_4 = arith.constant 0 : index
    %3 = vector.load %arg3[%c0_3, %c0_4] : memref<1x128xf32, #tpu.memory_space<vmem>>, vector<1x128xf32>
    %4 = vector.broadcast %3 : vector<1x128xf32> to vector<4x128xf32>
    %5 = arith.addf %2, %4 : vector<4x128xf32>
    %c0_5 = arith.constant 0 : index
    %c0_6 = arith.constant 0 : index
    %6 = vector.load %arg4[%c0_5, %c0_6] : memref<4x128xf32, #tpu.memory_space<vmem>>, vector<4x128xf32>
    tpu.vector_store %arg4[%c0_5, %c0_6], %5 {strides = array<i32>} : memref<4x128xf32, #tpu.memory_space<vmem>>, vector<4x128xf32>,
    return
  }
  func.func @transform_0(%arg0: i32) -> (i32, i32) {
    %c0_i32 = arith.constant 0 : i32
    %c0_i32_0 = arith.constant 0 : i32
    return %arg0, %c0_i32 : i32, i32
  }
  func.func @transform_1(%arg0: i32) -> (i32, i32) {
    %c0_i32 = arith.constant 0 : i32
    %c0_i32_0 = arith.constant 0 : i32
    %c0_i32_1 = arith.constant 0 : i32
    return %c0_i32, %c0_i32_0 : i32, i32
  }
  func.func @transform_2(%arg0: i32) -> (i32, i32) {
    %c0_i32 = arith.constant 0 : i32
    %c0_i32_0 = arith.constant 0 : i32
    %c0_i32_1 = arith.constant 0 : i32
    return %c0_i32, %c0_i32_0 : i32, i32
  }
  func.func @transform_3(%arg0: i32) -> (i32, i32) {
    %c0_i32 = arith.constant 0 : i32
    %c0_i32_0 = arith.constant 0 : i32
    return %arg0, %c0_i32 : i32, i32
  }
}

</mosaic_0001>

<llo_original>
// kernel: critic_forward.5
$region0: #{critic_forward.5}
  #allocation0 [shape = 'u32[]', space=smem, size = 0x4, offset = 0x4, fixed_abs, tag = 'smem constant byte address 0x4 - core index']
  #allocation1 [shape = 'u32[72,128]{1,0:T(1,128)}', space=vmem, size = 0x9000, scoped, tag = 'internal scratch']
  %s0 = inlined_call_operand.vmem [shape: bf16[512,64], index: 0, kind: input, shape index: {}]
  %s1 = inlined_call_operand.vmem [shape: bf16[64,128], index: 1, kind: input, shape index: {}]
  %s2 = inlined_call_operand.vmem [shape: f32[1,128], index: 2, kind: input, shape index: {}]
  %s3 = inlined_call_operand.vmem [shape: bf16[512,128], index: 3, kind: output, shape index: {}]
  %s4 = sld [smem:[#allocation0]]
  $region45: #{critic_forward.5} parent=0
    _
  %s6 = ssub.s32 1, %s4
  %s7 = scalar_select 0, %s6, %s4
  loop: start=0, step=1, limit=4
  $region2: #{critic_forward.5} parent=0 // loop_pre_header
    _
  $region3: #{critic_forward.5} parent=0 // loop_header
    %s9 = sphi 0, %s13
    %p10 = scmp.ge.s32.totalorder %s9, 4
    %s19 = sphi 0, %s21
    %s22 = sphi 0, %s19
    %s23 = sphi 0, %s22
    %s39 = sphi 0, %s23
    %s43 = sphi 0, %s43
    %s45 = sphi 0, %s43
    %s46 = sphi 0, %s45
    %s60 = sphi 0, %s46
    %s64 = sphi 0, %s64
    %s66 = sphi 0, %s64
    %s67 = sphi 0, %s66
    %s81 = sphi 0, %s67
    %s87 = sphi 0, %s89
    %s90 = sphi 0, %s87
    %s91 = sphi 0, %s90
    %s107 = sphi 0, %s91
  $region4: #{critic_forward.5} parent=0 // loop_header_branch
    %12 = sbr.rel (%p10) target = $region8
  $region5: #{critic_forward.5} parent=0 // loop_body
    %s14 = ssub.s32 %s9, 1
    %s15 = ssub.s32 %s9, 2
    %s16 = sadd.s32 %s9, 1
    %s17 = ssub.s32 %s9, %s16
    %p18 = scmp.eq.s32.totalorder %s17, 0
    %s20 = sadd.s32 %s19, 1
    %s21 = scalar_select %p18, %s19, %s20
    %p24 = pneg %p18
    %p25 = scmp.eq.s32.totalorder %s9, 1
    %p26 = por %p24, %p25
    %p27 = scmp.ne.s32.totalorder %s19, %s22
    %p28 = scmp.eq.s32.totalorder %s9, 0
    %p29 = por %p27, %p28
    %p30 = scmp.ne.s32.totalorder %s19, %s22
    %p31 = scmp.eq.s32.totalorder %s14, 1
    %p32 = por %p30, %p31
    %p33 = scmp.ne.s32.totalorder %s22, %s23
    %p34 = scmp.eq.s32.totalorder %s14, 0
    %p35 = por %p33, %p34
    %p36 = scmp.ne.s32.totalorder %s22, %s23
    %p37 = scmp.eq.s32.totalorder %s15, 1
    %p38 = por %p36, %p37
    %p40 = scmp.ne.s32.totalorder %s23, %s39
    %p41 = scmp.eq.s32.totalorder %s15, 0
    %p42 = por %p40, %p41
    %s44 = sadd.s32 %s43, 1
    %p47 = scmp.eq.s32.totalorder %s9, 1
    %p48 = scmp.ne.s32.totalorder %s43, %s45
    %p49 = scmp.eq.s32.totalorder %s9, 0
    %p50 = por %p48, %p49
    %p51 = scmp.ne.s32.totalorder %s43, %s45
    %p52 = scmp.eq.s32.totalorder %s14, 1
    %p53 = por %p51, %p52
    %p54 = scmp.ne.s32.totalorder %s45, %s46
    %p55 = scmp.eq.s32.totalorder %s14, 0
    %p56 = por %p54, %p55
    %p57 = scmp.ne.s32.totalorder %s45, %s46
    %p58 = scmp.eq.s32.totalorder %s15, 1
    %p59 = por %p57, %p58
    %p61 = scmp.ne.s32.totalorder %s46, %s60
    %p62 = scmp.eq.s32.totalorder %s15, 0
    %p63 = por %p61, %p62
    %s65 = sadd.s32 %s64, 1
    %p68 = scmp.eq.s32.totalorder %s9, 1
    %p69 = scmp.ne.s32.totalorder %s64, %s66
    %p70 = scmp.eq.s32.totalorder %s9, 0
    %p71 = por %p69, %p70
    %p72 = scmp.ne.s32.totalorder %s64, %s66
    %p73 = scmp.eq.s32.totalorder %s14, 1
    %p74 = por %p72, %p73
    %p75 = scmp.ne.s32.totalorder %s66, %s67
    %p76 = scmp.eq.s32.totalorder %s14, 0
    %p77 = por %p75, %p76
    %p78 = scmp.ne.s32.totalorder %s66, %s67
    %p79 = scmp.eq.s32.totalorder %s15, 1
    %p80 = por %p78, %p79
    %p82 = scmp.ne.s32.totalorder %s67, %s81
    %p83 = scmp.eq.s32.totalorder %s15, 0
    %p84 = por %p82, %p83
    %s85 = ssub.s32 %s9, %s16
    %p86 = scmp.eq.s32.totalorder %s85, 0
    %s88 = sadd.s32 %s87, 1
    %s89 = scalar_select %p86, %s87, %s88
    %p92 = pneg %p86
    %p93 = scmp.eq.s32.totalorder %s9, 1
    %p94 = por %p92, %p93
    %p95 = scmp.ne.s32.totalorder %s87, %s90
    %p96 = scmp.eq.s32.totalorder %s9, 0
    %p97 = por %p95, %p96
    %p98 = scmp.ne.s32.totalorder %s87, %s90
    %p99 = scmp.eq.s32.totalorder %s14, 1
    %p100 = por %p98, %p99
    %p101 = scmp.ne.s32.totalorder %s90, %s91
    %p102 = scmp.eq.s32.totalorder %s14, 0
    %p103 = por %p101, %p102
    %p104 = scmp.ne.s32.totalorder %s90, %s91
    %p105 = scmp.eq.s32.totalorder %s15, 1
    %p106 = por %p104, %p105
    %p108 = scmp.ne.s32.totalorder %s91, %s107
    %p109 = scmp.eq.s32.totalorder %s15, 0
    %p110 = por %p108, %p109
    %p111 = scmp.le.s32.totalorder 1, %s9
    %p112 = scmp.lt.s32.totalorder %s9, 3
    %p113 = pnand %p111, %p112
    %p114 = pneg %p113
    // Predicated region
    $region9: #{critic_forward.5} parent=5 // pred_check
      _
    $region10: #{critic_forward.5} parent=5 // pred_check_branch
      %116 = sbr.rel (%p113) target = $region12
    $region11: #{critic_forward.5} parent=5 // pred_region
      %s117 = ssub.s32 %s9, 1
      // Predicated region
      $region13: #{critic_forward.5} parent=11 // pred_check
        %p118 = pneg %p56
      $region14: #{critic_forward.5} parent=11 // pred_check_branch
        %120 = sbr.rel (%p118) target = $region16
      $region15: #{critic_forward.5} parent=11 // pred_region
        _
      $region16: #{critic_forward.5} parent=11 // pred_fallthru
        _
      // Predicated region
      $region17: #{critic_forward.5} parent=11 // pred_check
        %p121 = pneg %p77
      $region18: #{critic_forward.5} parent=11 // pred_check_branch
        %123 = sbr.rel (%p121) target = $region20
      $region19: #{critic_forward.5} parent=11 // pred_region
        _
      $region20: #{critic_forward.5} parent=11 // pred_fallthru
        _
    $region12: #{critic_forward.5} parent=5 // pred_fallthru
      _
    %p124 = scmp.lt.s32.totalorder %s9, 2
    // Predicated region
    $region21: #{critic_forward.5} parent=5 // pred_check
      %p125 = pneg %p124
    $region22: #{critic_forward.5} parent=5 // pred_check_branch
      %127 = sbr.rel (%p125) target = $region24
    $region23: #{critic_forward.5} parent=5 // pred_region
      // Predicated region
      $region25: #{critic_forward.5} parent=23 // pred_check
        %p128 = pneg %p29
      $region26: #{critic_forward.5} parent=23 // pred_check_branch
        %130 = sbr.rel (%p128) target = $region28
      $region27: #{critic_forward.5} parent=23 // pred_region
        %s131 = smul.u32 32, %s9
        %p132 = scmp.lt.s32.totalorder %s131, 63
        %s133 = scalar_select %p132, %s131, 63
        %s134 = smul.addr %s133, 4
        %s135 = scalar_lea.vmem %s0, %s134
        %s136 = smul.u32 32, %s9
      $region28: #{critic_forward.5} parent=23 // pred_fallthru
        _
    $region24: #{critic_forward.5} parent=5 // pred_fallthru
      _
    %p137 = scmp.le.s32.totalorder 1, %s9
    %p138 = scmp.lt.s32.totalorder %s9, 3
    %p139 = pnand %p137, %p138
    %p140 = pneg %p139
    // Predicated region
    $region29: #{critic_forward.5} parent=5 // pred_check
      _
    $region30: #{critic_forward.5} parent=5 // pred_check_branch
      %142 = sbr.rel (%p139) target = $region32
    $region31: #{critic_forward.5} parent=5 // pred_region
      %s143 = ssub.s32 %s9, 1
      %s144 = smul.u32 32, %s14
      %p145 = scmp.lt.s32.totalorder %s144, 63
      %s146 = scalar_select %p145, %s144, 63
      %s147 = smul.addr %s146, 4
      %s148 = scalar_lea.vmem %s0, %s147
      %p149 = pneg %p35
      %p150 = pneg %p32
      %p151 = pneg %p56
      %p152 = pneg %p53
      %p153 = pneg %p77
      %p154 = pneg %p74
      %p155 = pneg %p103
      %p156 = pneg %p100
      %s157 = smul.u32 32, %s14
      %p158 = scmp.lt.s32.totalorder %s157, 63
      %s159 = scalar_select %p158, %s157, 63
      %s160 = smul.addr %s159, 4
      %s161 = scalar_lea.vmem %s3, %s160
      %s162 = smul.u32 32, %s14
      %p163 = scmp.lt.s32.totalorder %s162, 63
      %s164 = scalar_select %p163, %s162, 63
      %s165 = smul.addr %s164, 4
      %s166 = scalar_lea.vmem %s0, %s165
      %s167 = smul.u32 32, %s14
      %s168 = smul.u32 32, %s14
      %p169 = scmp.lt.s32.totalorder %s168, 63
      %s170 = scalar_select %p169, %s168, 63
      %s171 = smul.addr %s170, 4
      %s172 = scalar_lea.vmem %s3, %s171
      %s173 = smul.u32 32, %s14
      %v175 = vld [vmem:[%s166] sm:$0xf]
      %v176 = vld [vmem:[%s166 + $0x4] sm:$0xf]
      %v177 = vld [vmem:[%s166 + $0x8] sm:$0xf]
      %v178 = vld [vmem:[%s166 + $0xc] sm:$0xf]
      %v179 = vld [vmem:[%s166 + $0x10] sm:$0xf]
      %v180 = vld [vmem:[%s166 + $0x14] sm:$0xf]
      %v181 = vld [vmem:[%s166 + $0x18] sm:$0xf]
      %v182 = vld [vmem:[%s166 + $0x1c] sm:$0xf]
      %v183 = vld [vmem:[%s166 + $0x20] sm:$0xf]
      %v184 = vld [vmem:[%s166 + $0x24] sm:$0xf]
      %v185 = vld [vmem:[%s166 + $0x28] sm:$0xf]
      %v186 = vld [vmem:[%s166 + $0x2c] sm:$0xf]
      %v187 = vld [vmem:[%s166 + $0x30] sm:$0xf]
      %v188 = vld [vmem:[%s166 + $0x34] sm:$0xf]
      %v189 = vld [vmem:[%s166 + $0x38] sm:$0xf]
      %v190 = vld [vmem:[%s166 + $0x3c] sm:$0xf]
      %v191 = vld [vmem:[%s166 + $0x40] sm:$0xf]
      %v192 = vld [vmem:[%s166 + $0x44] sm:$0xf]
      %v193 = vld [vmem:[%s166 + $0x48] sm:$0xf]
      %v194 = vld [vmem:[%s166 + $0x4c] sm:$0xf]
      %v195 = vld [vmem:[%s166 + $0x50] sm:$0xf]
      %v196 = vld [vmem:[%s166 + $0x54] sm:$0xf]
      %v197 = vld [vmem:[%s166 + $0x58] sm:$0xf]
      %v198 = vld [vmem:[%s166 + $0x5c] sm:$0xf]
      %v199 = vld [vmem:[%s166 + $0x60] sm:$0xf]
      %v200 = vld [vmem:[%s166 + $0x64] sm:$0xf]
      %v201 = vld [vmem:[%s166 + $0x68] sm:$0xf]
      %v202 = vld [vmem:[%s166 + $0x6c] sm:$0xf]
      %v203 = vld [vmem:[%s166 + $0x70] sm:$0xf]
      %v204 = vld [vmem:[%s166 + $0x74] sm:$0xf]
      %v205 = vld [vmem:[%s166 + $0x78] sm:$0xf]
      %v206 = vld [vmem:[%s166 + $0x7c] sm:$0xf]
      %v207 = vld [vmem:[%s1] sm:$0xf]
      %v208 = vld [vmem:[%s1 + $0x4] sm:$0xf]
      %v209 = vld [vmem:[%s1 + $0x8] sm:$0xf]
      %v210 = vld [vmem:[%s1 + $0xc] sm:$0xf]
      %v211 = vld [vmem:[%s1 + $0x10] sm:$0xf]
      %v212 = vld [vmem:[%s1 + $0x14] sm:$0xf]
      %v213 = vld [vmem:[%s1 + $0x18] sm:$0xf]
      %v214 = vld [vmem:[%s1 + $0x1c] sm:$0xf]
      %v215 = vld [vmem:[%s2] sm:$0x1]
      %v217 = vperm.slane %v215, 0
      %v251 = vunpack.c.l.b16 %v175
      %v252 = vunpack.c.l.b16 %v176
      %v253 = vunpack.c.l.b16 %v177
      %v254 = vunpack.c.l.b16 %v178
      %v255 = vunpack.c.l.b16 %v179
      %v256 = vunpack.c.l.b16 %v180
      %v257 = vunpack.c.l.b16 %v181
      %v258 = vunpack.c.l.b16 %v182
      %v259 = vunpack.c.l.b16 %v183
      %v260 = vunpack.c.l.b16 %v184
      %v261 = vunpack.c.l.b16 %v185
      %v262 = vunpack.c.l.b16 %v186
      %v263 = vunpack.c.l.b16 %v187
      %v264 = vunpack.c.l.b16 %v188
      %v265 = vunpack.c.l.b16 %v189
      %v266 = vunpack.c.l.b16 %v190
      %v267 = vunpack.c.l.b16 %v191
      %v268 = vunpack.c.l.b16 %v192
      %v269 = vunpack.c.l.b16 %v193
      %v270 = vunpack.c.l.b16 %v194
      %v271 = vunpack.c.l.b16 %v195
      %v272 = vunpack.c.l.b16 %v196
      %v273 = vunpack.c.l.b16 %v197
      %v274 = vunpack.c.l.b16 %v198
      %v275 = vunpack.c.l.b16 %v199
      %v276 = vunpack.c.l.b16 %v200
      %v277 = vunpack.c.l.b16 %v201
      %v278 = vunpack.c.l.b16 %v202
      %v279 = vunpack.c.l.b16 %v203
      %v280 = vunpack.c.l.b16 %v204
      %v281 = vunpack.c.l.b16 %v205
      %v282 = vunpack.c.l.b16 %v206
      %v283 = vpack.c.b16 %v252, %v251
      %v284 = vpack.c.b16 %v254, %v253
      %v285 = vpack.c.b16 %v256, %v255
      %v286 = vpack.c.b16 %v258, %v257
      %v287 = vpack.c.b16 %v260, %v259
      %v288 = vpack.c.b16 %v262, %v261
      %v289 = vpack.c.b16 %v264, %v263
      %v290 = vpack.c.b16 %v266, %v265
      %v291 = vpack.c.b16 %v268, %v267
      %v292 = vpack.c.b16 %v270, %v269
      %v293 = vpack.c.b16 %v272, %v271
      %v294 = vpack.c.b16 %v274, %v273
      %v295 = vpack.c.b16 %v276, %v275
      %v296 = vpack.c.b16 %v278, %v277
      %v297 = vpack.c.b16 %v280, %v279
      %v298 = vpack.c.b16 %v282, %v281
      %v307 = vunpack.c.l.b16 %v207
      %v308 = vunpack.c.l.b16 %v208
      %v309 = vunpack.c.l.b16 %v209
      %v310 = vunpack.c.l.b16 %v210
      %v311 = vunpack.c.l.b16 %v211
      %v312 = vunpack.c.l.b16 %v212
      %v313 = vunpack.c.l.b16 %v213
      %v314 = vunpack.c.l.b16 %v214
      %v315 = vpack.c.b16 %v308, %v307
      %v316 = vpack.c.b16 %v310, %v309
      %v317 = vpack.c.b16 %v312, %v311
      %v318 = vpack.c.b16 %v314, %v313
      %vm323 = vcmask 523264
      %v325 = vsel %vm323, %v283, 0
      %v328 = vsel %vm323, %v284, 0
      %v331 = vsel %vm323, %v285, 0
      %v334 = vsel %vm323, %v286, 0
      %v337 = vsel %vm323, %v287, 0
      %v340 = vsel %vm323, %v288, 0
      %v343 = vsel %vm323, %v289, 0
      %v346 = vsel %vm323, %v290, 0
      %v349 = vsel %vm323, %v291, 0
      %v352 = vsel %vm323, %v292, 0
      %v355 = vsel %vm323, %v293, 0
      %v358 = vsel %vm323, %v294, 0
      %v361 = vsel %vm323, %v295, 0
      %v364 = vsel %vm323, %v296, 0
      %v367 = vsel %vm323, %v297, 0
      %v370 = vsel %vm323, %v298, 0
      %372 = vmatpush.bf16.msra.mxu0 0
      %373 = vmatpush.bf16.msra.mxu0 0
      %374 = vmatpush.bf16.msra.mxu0 0
      %375 = vmatpush.bf16.msra.mxu0 0
      %376 = vmatpush.bf16.msra.mxu0 %v318
      %377 = vmatpush.bf16.msra.mxu0 %v317
      %378 = vmatpush.bf16.msra.mxu0 %v316
      %379 = vmatpush.bf16.msra.mxu0 %v315
      %380 = vmatmul.bf16.gmra.mxu0 %v325
      %v381 = vpop.f32.mrf.mxu0
      %v382 = vadd.f32 %v217, %v381
      %v383 = vpop.f32.mrf.mxu0
      %v384 = vadd.f32 %v217, %v383
      %385 = vmatmul.bf16.gmra.mxu0 %v328
      %v386 = vpop.f32.mrf.mxu0
      %v387 = vadd.f32 %v217, %v386
      %v388 = vpop.f32.mrf.mxu0
      %v389 = vadd.f32 %v217, %v388
      %390 = vmatmul.bf16.gmra.mxu0 %v331
      %v391 = vpop.f32.mrf.mxu0
      %v392 = vadd.f32 %v217, %v391
      %v393 = vpop.f32.mrf.mxu0
      %v394 = vadd.f32 %v217, %v393
      %395 = vmatmul.bf16.gmra.mxu0 %v334
      %v396 = vpop.f32.mrf.mxu0
      %v397 = vadd.f32 %v217, %v396
      %v398 = vpop.f32.mrf.mxu0
      %v399 = vadd.f32 %v217, %v398
      %400 = vmatmul.bf16.gmra.mxu0 %v337
      %v401 = vpop.f32.mrf.mxu0
      %v402 = vadd.f32 %v217, %v401
      %v403 = vpop.f32.mrf.mxu0
      %v404 = vadd.f32 %v217, %v403
      %405 = vmatmul.bf16.gmra.mxu0 %v340
      %v406 = vpop.f32.mrf.mxu0
      %v407 = vadd.f32 %v217, %v406
      %v408 = vpop.f32.mrf.mxu0
      %v409 = vadd.f32 %v217, %v408
      %410 = vmatmul.bf16.gmra.mxu0 %v343
      %v411 = vpop.f32.mrf.mxu0
      %v412 = vadd.f32 %v217, %v411
      %v413 = vpop.f32.mrf.mxu0
      %v414 = vadd.f32 %v217, %v413
      %415 = vmatmul.bf16.gmra.mxu0 %v346
      %v416 = vpop.f32.mrf.mxu0
      %v417 = vadd.f32 %v217, %v416
      %v418 = vpop.f32.mrf.mxu0
      %v419 = vadd.f32 %v217, %v418
      %420 = vmatmul.bf16.gmra.mxu0 %v349
      %v421 = vpop.f32.mrf.mxu0
      %v422 = vadd.f32 %v217, %v421
      %v423 = vpop.f32.mrf.mxu0
      %v424 = vadd.f32 %v217, %v423
      %425 = vmatmul.bf16.gmra.mxu0 %v352
      %v426 = vpop.f32.mrf.mxu0
      %v427 = vadd.f32 %v217, %v426
      %v428 = vpop.f32.mrf.mxu0
      %v429 = vadd.f32 %v217, %v428
      %430 = vmatmul.bf16.gmra.mxu0 %v355
      %v431 = vpop.f32.mrf.mxu0
      %v432 = vadd.f32 %v217, %v431
      %v433 = vpop.f32.mrf.mxu0
      %v434 = vadd.f32 %v217, %v433
      %435 = vmatmul.bf16.gmra.mxu0 %v358
      %v436 = vpop.f32.mrf.mxu0
      %v437 = vadd.f32 %v217, %v436
      %v438 = vpop.f32.mrf.mxu0
      %v439 = vadd.f32 %v217, %v438
      %440 = vmatmul.bf16.gmra.mxu0 %v361
      %v441 = vpop.f32.mrf.mxu0
      %v442 = vadd.f32 %v217, %v441
      %v443 = vpop.f32.mrf.mxu0
      %v444 = vadd.f32 %v217, %v443
      %445 = vmatmul.bf16.gmra.mxu0 %v364
      %v446 = vpop.f32.mrf.mxu0
      %v447 = vadd.f32 %v217, %v446
      %v448 = vpop.f32.mrf.mxu0
      %v449 = vadd.f32 %v217, %v448
      %450 = vmatmul.bf16.gmra.mxu0 %v367
      %v451 = vpop.f32.mrf.mxu0
      %v452 = vadd.f32 %v217, %v451
      %v453 = vpop.f32.mrf.mxu0
      %v454 = vadd.f32 %v217, %v453
      %455 = vmatmul.bf16.gmra.mxu0 %v370
      %v456 = vpop.f32.mrf.mxu0
      %v457 = vadd.f32 %v217, %v456
      %v458 = vpop.f32.mrf.mxu0
      %v459 = vadd.f32 %v217, %v458
      %460 = vdwg.mxu0
      %vm461 = vcmp.ge.f32.partialorder %v382, 0.0
      %vm462 = vcmp.ge.f32.partialorder %v384, 0.0
      %vm463 = vcmp.ge.f32.partialorder %v387, 0.0
      %vm464 = vcmp.ge.f32.partialorder %v389, 0.0
      %vm465 = vcmp.ge.f32.partialorder %v392, 0.0
      %vm466 = vcmp.ge.f32.partialorder %v394, 0.0
      %vm467 = vcmp.ge.f32.partialorder %v397, 0.0
      %vm468 = vcmp.ge.f32.partialorder %v399, 0.0
      %vm469 = vcmp.ge.f32.partialorder %v402, 0.0
      %vm470 = vcmp.ge.f32.partialorder %v404, 0.0
      %vm471 = vcmp.ge.f32.partialorder %v407, 0.0
      %vm472 = vcmp.ge.f32.partialorder %v409, 0.0
      %vm473 = vcmp.ge.f32.partialorder %v412, 0.0
      %vm474 = vcmp.ge.f32.partialorder %v414, 0.0
      %vm475 = vcmp.ge.f32.partialorder %v417, 0.0
      %vm476 = vcmp.ge.f32.partialorder %v419, 0.0
      %vm477 = vcmp.ge.f32.partialorder %v422, 0.0
      %vm478 = vcmp.ge.f32.partialorder %v424, 0.0
      %vm479 = vcmp.ge.f32.partialorder %v427, 0.0
      %vm480 = vcmp.ge.f32.partialorder %v429, 0.0
      %vm481 = vcmp.ge.f32.partialorder %v432, 0.0
      %vm482 = vcmp.ge.f32.partialorder %v434, 0.0
      %vm483 = vcmp.ge.f32.partialorder %v437, 0.0
      %vm484 = vcmp.ge.f32.partialorder %v439, 0.0
      %vm485 = vcmp.ge.f32.partialorder %v442, 0.0
      %vm486 = vcmp.ge.f32.partialorder %v444, 0.0
      %vm487 = vcmp.ge.f32.partialorder %v447, 0.0
      %vm488 = vcmp.ge.f32.partialorder %v449, 0.0
      %vm489 = vcmp.ge.f32.partialorder %v452, 0.0
      %vm490 = vcmp.ge.f32.partialorder %v454, 0.0
      %vm491 = vcmp.ge.f32.partialorder %v457, 0.0
      %vm492 = vcmp.ge.f32.partialorder %v459, 0.0
      %v493 = vmul.f32 %v382, 0.01
      %v494 = vmul.f32 %v384, 0.01
      %v495 = vmul.f32 %v387, 0.01
      %v496 = vmul.f32 %v389, 0.01
      %v497 = vmul.f32 %v392, 0.01
      %v498 = vmul.f32 %v394, 0.01
      %v499 = vmul.f32 %v397, 0.01
      %v500 = vmul.f32 %v399, 0.01
      %v501 = vmul.f32 %v402, 0.01
      %v502 = vmul.f32 %v404, 0.01
      %v503 = vmul.f32 %v407, 0.01
      %v504 = vmul.f32 %v409, 0.01
      %v505 = vmul.f32 %v412, 0.01
      %v506 = vmul.f32 %v414, 0.01
      %v507 = vmul.f32 %v417, 0.01
      %v508 = vmul.f32 %v419, 0.01
      %v509 = vmul.f32 %v422, 0.01
      %v510 = vmul.f32 %v424, 0.01
      %v511 = vmul.f32 %v427, 0.01
      %v512 = vmul.f32 %v429, 0.01
      %v513 = vmul.f32 %v432, 0.01
      %v514 = vmul.f32 %v434, 0.01
      %v515 = vmul.f32 %v437, 0.01
      %v516 = vmul.f32 %v439, 0.01
      %v517 = vmul.f32 %v442, 0.01
      %v518 = vmul.f32 %v444, 0.01
      %v519 = vmul.f32 %v447, 0.01
      %v520 = vmul.f32 %v449, 0.01
      %v521 = vmul.f32 %v452, 0.01
      %v522 = vmul.f32 %v454, 0.01
      %v523 = vmul.f32 %v457, 0.01
      %v524 = vmul.f32 %v459, 0.01
      %v525 = vsel %vm461, %v382, %v493
      %v526 = vsel %vm462, %v384, %v494
      %v527 = vsel %vm463, %v387, %v495
      %v528 = vsel %vm464, %v389, %v496
      %v529 = vsel %vm465, %v392, %v497
      %v530 = vsel %vm466, %v394, %v498
      %v531 = vsel %vm467, %v397, %v499
      %v532 = vsel %vm468, %v399, %v500
      %v533 = vsel %vm469, %v402, %v501
      %v534 = vsel %vm470, %v404, %v502
      %v535 = vsel %vm471, %v407, %v503
      %v536 = vsel %vm472, %v409, %v504
      %v537 = vsel %vm473, %v412, %v505
      %v538 = vsel %vm474, %v414, %v506
      %v539 = vsel %vm475, %v417, %v507
      %v540 = vsel %vm476, %v419, %v508
      %v541 = vsel %vm477, %v422, %v509
      %v542 = vsel %vm478, %v424, %v510
      %v543 = vsel %vm479, %v427, %v511
      %v544 = vsel %vm480, %v429, %v512
      %v545 = vsel %vm481, %v432, %v513
      %v546 = vsel %vm482, %v434, %v514
      %v547 = vsel %vm483, %v437, %v515
      %v548 = vsel %vm484, %v439, %v516
      %v549 = vsel %vm485, %v442, %v517
      %v550 = vsel %vm486, %v444, %v518
      %v551 = vsel %vm487, %v447, %v519
      %v552 = vsel %vm488, %v449, %v520
      %v553 = vsel %vm489, %v452, %v521
      %v554 = vsel %vm490, %v454, %v522
      %v555 = vsel %vm491, %v457, %v523
      %v556 = vsel %vm492, %v459, %v524
      %v557 = vpack.c.bf16 %v525, %v525
      %v558 = vpack.c.bf16 %v526, %v526
      %v559 = vpack.c.bf16 %v527, %v527
      %v560 = vpack.c.bf16 %v528, %v528
      %v561 = vpack.c.bf16 %v529, %v529
      %v562 = vpack.c.bf16 %v530, %v530
      %v563 = vpack.c.bf16 %v531, %v531
      %v564 = vpack.c.bf16 %v532, %v532
      %v565 = vpack.c.bf16 %v533, %v533
      %v566 = vpack.c.bf16 %v534, %v534
      %v567 = vpack.c.bf16 %v535, %v535
      %v568 = vpack.c.bf16 %v536, %v536
      %v569 = vpack.c.bf16 %v537, %v537
      %v570 = vpack.c.bf16 %v538, %v538
      %v571 = vpack.c.bf16 %v539, %v539
      %v572 = vpack.c.bf16 %v540, %v540
      %v573 = vpack.c.bf16 %v541, %v541
      %v574 = vpack.c.bf16 %v542, %v542
      %v575 = vpack.c.bf16 %v543, %v543
      %v576 = vpack.c.bf16 %v544, %v544
      %v577 = vpack.c.bf16 %v545, %v545
      %v578 = vpack.c.bf16 %v546, %v546
      %v579 = vpack.c.bf16 %v547, %v547
      %v580 = vpack.c.bf16 %v548, %v548
      %v581 = vpack.c.bf16 %v549, %v549
      %v582 = vpack.c.bf16 %v550, %v550
      %v583 = vpack.c.bf16 %v551, %v551
      %v584 = vpack.c.bf16 %v552, %v552
      %v585 = vpack.c.bf16 %v553, %v553
      %v586 = vpack.c.bf16 %v554, %v554
      %v587 = vpack.c.bf16 %v555, %v555
      %v588 = vpack.c.bf16 %v556, %v556
      %589 = vst [vmem:[%s172] sm:$0xf] %v557
      %590 = vst [vmem:[%s172 + $0x4] sm:$0xf] %v558
      %591 = vst [vmem:[%s172 + $0x8] sm:$0xf] %v559
      %592 = vst [vmem:[%s172 + $0xc] sm:$0xf] %v560
      %593 = vst [vmem:[%s172 + $0x10] sm:$0xf] %v561
      %594 = vst [vmem:[%s172 + $0x14] sm:$0xf] %v562
      %595 = vst [vmem:[%s172 + $0x18] sm:$0xf] %v563
      %596 = vst [vmem:[%s172 + $0x1c] sm:$0xf] %v564
      %597 = vst [vmem:[%s172 + $0x20] sm:$0xf] %v565
      %598 = vst [vmem:[%s172 + $0x24] sm:$0xf] %v566
      %599 = vst [vmem:[%s172 + $0x28] sm:$0xf] %v567
      %600 = vst [vmem:[%s172 + $0x2c] sm:$0xf] %v568
      %601 = vst [vmem:[%s172 + $0x30] sm:$0xf] %v569
      %602 = vst [vmem:[%s172 + $0x34] sm:$0xf] %v570
      %603 = vst [vmem:[%s172 + $0x38] sm:$0xf] %v571
      %604 = vst [vmem:[%s172 + $0x3c] sm:$0xf] %v572
      %605 = vst [vmem:[%s172 + $0x40] sm:$0xf] %v573
      %606 = vst [vmem:[%s172 + $0x44] sm:$0xf] %v574
      %607 = vst [vmem:[%s172 + $0x48] sm:$0xf] %v575
      %608 = vst [vmem:[%s172 + $0x4c] sm:$0xf] %v576
      %609 = vst [vmem:[%s172 + $0x50] sm:$0xf] %v577
      %610 = vst [vmem:[%s172 + $0x54] sm:$0xf] %v578
      %611 = vst [vmem:[%s172 + $0x58] sm:$0xf] %v579
      %612 = vst [vmem:[%s172 + $0x5c] sm:$0xf] %v580
      %613 = vst [vmem:[%s172 + $0x60] sm:$0xf] %v581
      %614 = vst [vmem:[%s172 + $0x64] sm:$0xf] %v582
      %615 = vst [vmem:[%s172 + $0x68] sm:$0xf] %v583
      %616 = vst [vmem:[%s172 + $0x6c] sm:$0xf] %v584
      %617 = vst [vmem:[%s172 + $0x70] sm:$0xf] %v585
      %618 = vst [vmem:[%s172 + $0x74] sm:$0xf] %v586
      %619 = vst [vmem:[%s172 + $0x78] sm:$0xf] %v587
      %620 = vst [vmem:[%s172 + $0x7c] sm:$0xf] %v588
      %s621 = smul.u32 32, %s14
      %p622 = scmp.lt.s32.totalorder %s621, 63
      %s623 = scalar_select %p622, %s621, 63
      %s624 = smul.addr %s623, 4
      %s625 = scalar_lea.vmem %s3, %s624
      // Predicated region
      $region33: #{critic_forward.5} parent=31 // pred_check
        %p626 = pneg %p100
      $region34: #{critic_forward.5} parent=31 // pred_check_branch
        %628 = sbr.rel (%p626) target = $region36
      $region35: #{critic_forward.5} parent=31 // pred_region
        %s629 = smul.u32 32, %s14
      $region36: #{critic_forward.5} parent=31 // pred_fallthru
        _
    $region32: #{critic_forward.5} parent=5 // pred_fallthru
      _
    %p630 = scmp.le.s32.totalorder 2, %s9
    // Predicated region
    $region37: #{critic_forward.5} parent=5 // pred_check
      %p631 = pneg %p630
    $region38: #{critic_forward.5} parent=5 // pred_check_branch
      %633 = sbr.rel (%p631) target = $region40
    $region39: #{critic_forward.5} parent=5 // pred_region
      %s634 = ssub.s32 %s9, 2
      // Predicated region
      $region41: #{critic_forward.5} parent=39 // pred_check
        %p635 = pneg %p106
      $region42: #{critic_forward.5} parent=39 // pred_check_branch
        %637 = sbr.rel (%p635) target = $region44
      $region43: #{critic_forward.5} parent=39 // pred_region
        %s638 = smul.u32 32, %s15
        %p639 = scmp.lt.s32.totalorder %s638, 63
        %s640 = scalar_select %p639, %s638, 63
        %s641 = smul.addr %s640, 4
        %s642 = scalar_lea.vmem %s3, %s641
      $region44: #{critic_forward.5} parent=39 // pred_fallthru
        _
    $region40: #{critic_forward.5} parent=5 // pred_fallthru
      _
  $region6: #{critic_forward.5} parent=0 // loop_footer
    %s13 = sadd.s32 1, %s9
  $region7: #{critic_forward.5} parent=0 // loop_footer_branch
    %8 = sbr.rel target = $region3
  $region8: #{critic_forward.5} parent=0 // loop_exit
    _

// kernel: critic_forward.6
$region0: #{critic_forward.6}
  #allocation0 [shape = 'u32[]', space=smem, size = 0x4, offset = 0x4, fixed_abs, tag = 'smem constant byte address 0x4 - core index']
  #allocation1 [shape = 'u32[72,128]{1,0:T(1,128)}', space=vmem, size = 0x9000, scoped, tag = 'internal scratch']
  %s0 = inlined_call_operand.vmem [shape: bf16[128,128], index: 0, kind: input, shape index: {}]
  %s1 = inlined_call_operand.vmem [shape: bf16[128,128], index: 1, kind: input, shape index: {}]
  %s2 = inlined_call_operand.vmem [shape: f32[1,128], index: 2, kind: input, shape index: {}]
  %s3 = inlined_call_operand.vmem [shape: bf16[128,128], index: 3, kind: output, shape index: {}]
  %s4 = sld [smem:[#allocation0]]
  $region22: #{critic_forward.6} parent=0
    _
  %s6 = ssub.s32 1, %s4
  %s7 = scalar_select 0, %s6, %s4
  // Predicated region
  $region2: #{critic_forward.6} parent=0 // pred_check
    _
  $region3: #{critic_forward.6} parent=0 // pred_check_branch
    %9 = sbr.rel (0) target = $region5
  $region4: #{critic_forward.6} parent=0 // pred_region
    _
  $region5: #{critic_forward.6} parent=0 // pred_fallthru
    _
  // Predicated region
  $region6: #{critic_forward.6} parent=0 // pred_check
    _
  $region7: #{critic_forward.6} parent=0 // pred_check_branch
    %11 = sbr.rel (0) target = $region9
  $region8: #{critic_forward.6} parent=0 // pred_region
    _
  $region9: #{critic_forward.6} parent=0 // pred_fallthru
    _
  // Predicated region
  $region10: #{critic_forward.6} parent=0 // pred_check
    _
  $region11: #{critic_forward.6} parent=0 // pred_check_branch
    %13 = sbr.rel (0) target = $region13
  $region12: #{critic_forward.6} parent=0 // pred_region
    _
  $region13: #{critic_forward.6} parent=0 // pred_fallthru
    _
  %v14 = vld [vmem:[%s0] sm:$0xf]
  %v15 = vld [vmem:[%s0 + $0x4] sm:$0xf]
  %v16 = vld [vmem:[%s0 + $0x8] sm:$0xf]
  %v17 = vld [vmem:[%s0 + $0xc] sm:$0xf]
  %v18 = vld [vmem:[%s0 + $0x10] sm:$0xf]
  %v19 = vld [vmem:[%s0 + $0x14] sm:$0xf]
  %v20 = vld [vmem:[%s0 + $0x18] sm:$0xf]
  %v21 = vld [vmem:[%s0 + $0x1c] sm:$0xf]
  %v22 = vld [vmem:[%s0 + $0x20] sm:$0xf]
  %v23 = vld [vmem:[%s0 + $0x24] sm:$0xf]
  %v24 = vld [vmem:[%s0 + $0x28] sm:$0xf]
  %v25 = vld [vmem:[%s0 + $0x2c] sm:$0xf]
  %v26 = vld [vmem:[%s0 + $0x30] sm:$0xf]
  %v27 = vld [vmem:[%s0 + $0x34] sm:$0xf]
  %v28 = vld [vmem:[%s0 + $0x38] sm:$0xf]
  %v29 = vld [vmem:[%s0 + $0x3c] sm:$0xf]
  %v30 = vld [vmem:[%s1] sm:$0xf]
  %v31 = vld [vmem:[%s1 + $0x4] sm:$0xf]
  %v32 = vld [vmem:[%s1 + $0x8] sm:$0xf]
  %v33 = vld [vmem:[%s1 + $0xc] sm:$0xf]
  %v34 = vld [vmem:[%s1 + $0x10] sm:$0xf]
  %v35 = vld [vmem:[%s1 + $0x14] sm:$0xf]
  %v36 = vld [vmem:[%s1 + $0x18] sm:$0xf]
  %v37 = vld [vmem:[%s1 + $0x1c] sm:$0xf]
  %v38 = vld [vmem:[%s1 + $0x20] sm:$0xf]
  %v39 = vld [vmem:[%s1 + $0x24] sm:$0xf]
  %v40 = vld [vmem:[%s1 + $0x28] sm:$0xf]
  %v41 = vld [vmem:[%s1 + $0x2c] sm:$0xf]
  %v42 = vld [vmem:[%s1 + $0x30] sm:$0xf]
  %v43 = vld [vmem:[%s1 + $0x34] sm:$0xf]
  %v44 = vld [vmem:[%s1 + $0x38] sm:$0xf]
  %v45 = vld [vmem:[%s1 + $0x3c] sm:$0xf]
  %v46 = vld [vmem:[%s2] sm:$0x1]
  %v48 = vperm.slane %v46, 0
  %v66 = vunpack.c.l.b16 %v14
  %v67 = vunpack.c.l.b16 %v15
  %v68 = vunpack.c.l.b16 %v16
  %v69 = vunpack.c.l.b16 %v17
  %v70 = vunpack.c.l.b16 %v18
  %v71 = vunpack.c.l.b16 %v19
  %v72 = vunpack.c.l.b16 %v20
  %v73 = vunpack.c.l.b16 %v21
  %v74 = vunpack.c.l.b16 %v22
  %v75 = vunpack.c.l.b16 %v23
  %v76 = vunpack.c.l.b16 %v24
  %v77 = vunpack.c.l.b16 %v25
  %v78 = vunpack.c.l.b16 %v26
  %v79 = vunpack.c.l.b16 %v27
  %v80 = vunpack.c.l.b16 %v28
  %v81 = vunpack.c.l.b16 %v29
  %v82 = vpack.c.b16 %v67, %v66
  %v83 = vpack.c.b16 %v69, %v68
  %v84 = vpack.c.b16 %v71, %v70
  %v85 = vpack.c.b16 %v73, %v72
  %v86 = vpack.c.b16 %v75, %v74
  %v87 = vpack.c.b16 %v77, %v76
  %v88 = vpack.c.b16 %v79, %v78
  %v89 = vpack.c.b16 %v81, %v80
  %v114 = vunpack.c.l.b16 %v30
  %v115 = vunpack.c.l.b16 %v31
  %v116 = vunpack.c.l.b16 %v32
  %v117 = vunpack.c.l.b16 %v33
  %v118 = vunpack.c.l.b16 %v34
  %v119 = vunpack.c.l.b16 %v35
  %v120 = vunpack.c.l.b16 %v36
  %v121 = vunpack.c.l.b16 %v37
  %v122 = vunpack.c.l.b16 %v38
  %v123 = vunpack.c.l.b16 %v39
  %v124 = vunpack.c.l.b16 %v40
  %v125 = vunpack.c.l.b16 %v41
  %v126 = vunpack.c.l.b16 %v42
  %v127 = vunpack.c.l.b16 %v43
  %v128 = vunpack.c.l.b16 %v44
  %v129 = vunpack.c.l.b16 %v45
  %v130 = vpack.c.b16 %v115, %v114
  %v131 = vpack.c.b16 %v117, %v116
  %v132 = vpack.c.b16 %v119, %v118
  %v133 = vpack.c.b16 %v121, %v120
  %v134 = vpack.c.b16 %v123, %v122
  %v135 = vpack.c.b16 %v125, %v124
  %v136 = vpack.c.b16 %v127, %v126
  %v137 = vpack.c.b16 %v129, %v128
  %146 = vmatpush.bf16.msra.mxu0 %v137
  %147 = vmatpush.bf16.msra.mxu0 %v136
  %148 = vmatpush.bf16.msra.mxu0 %v135
  %149 = vmatpush.bf16.msra.mxu0 %v134
  %150 = vmatpush.bf16.msra.mxu0 %v133
  %151 = vmatpush.bf16.msra.mxu0 %v132
  %152 = vmatpush.bf16.msra.mxu0 %v131
  %153 = vmatpush.bf16.msra.mxu0 %v130
  %154 = vmatmul.bf16.gmra.mxu0 %v82
  %v155 = vpop.f32.mrf.mxu0
  %v156 = vadd.f32 %v48, %v155
  %v157 = vpop.f32.mrf.mxu0
  %v158 = vadd.f32 %v48, %v157
  %159 = vmatmul.bf16.gmra.mxu0 %v83
  %v160 = vpop.f32.mrf.mxu0
  %v161 = vadd.f32 %v48, %v160
  %v162 = vpop.f32.mrf.mxu0
  %v163 = vadd.f32 %v48, %v162
  %164 = vmatmul.bf16.gmra.mxu0 %v84
  %v165 = vpop.f32.mrf.mxu0
  %v166 = vadd.f32 %v48, %v165
  %v167 = vpop.f32.mrf.mxu0
  %v168 = vadd.f32 %v48, %v167
  %169 = vmatmul.bf16.gmra.mxu0 %v85
  %v170 = vpop.f32.mrf.mxu0
  %v171 = vadd.f32 %v48, %v170
  %v172 = vpop.f32.mrf.mxu0
  %v173 = vadd.f32 %v48, %v172
  %174 = vmatmul.bf16.gmra.mxu0 %v86
  %v175 = vpop.f32.mrf.mxu0
  %v176 = vadd.f32 %v48, %v175
  %v177 = vpop.f32.mrf.mxu0
  %v178 = vadd.f32 %v48, %v177
  %179 = vmatmul.bf16.gmra.mxu0 %v87
  %v180 = vpop.f32.mrf.mxu0
  %v181 = vadd.f32 %v48, %v180
  %v182 = vpop.f32.mrf.mxu0
  %v183 = vadd.f32 %v48, %v182
  %184 = vmatmul.bf16.gmra.mxu0 %v88
  %v185 = vpop.f32.mrf.mxu0
  %v186 = vadd.f32 %v48, %v185
  %v187 = vpop.f32.mrf.mxu0
  %v188 = vadd.f32 %v48, %v187
  %189 = vmatmul.bf16.gmra.mxu0 %v89
  %v190 = vpop.f32.mrf.mxu0
  %v191 = vadd.f32 %v48, %v190
  %v192 = vpop.f32.mrf.mxu0
  %v193 = vadd.f32 %v48, %v192
  %194 = vdwg.mxu0
  %vm195 = vcmp.ge.f32.partialorder %v156, 0.0
  %vm196 = vcmp.ge.f32.partialorder %v158, 0.0
  %vm197 = vcmp.ge.f32.partialorder %v161, 0.0
  %vm198 = vcmp.ge.f32.partialorder %v163, 0.0
  %vm199 = vcmp.ge.f32.partialorder %v166, 0.0
  %vm200 = vcmp.ge.f32.partialorder %v168, 0.0
  %vm201 = vcmp.ge.f32.partialorder %v171, 0.0
  %vm202 = vcmp.ge.f32.partialorder %v173, 0.0
  %vm203 = vcmp.ge.f32.partialorder %v176, 0.0
  %vm204 = vcmp.ge.f32.partialorder %v178, 0.0
  %vm205 = vcmp.ge.f32.partialorder %v181, 0.0
  %vm206 = vcmp.ge.f32.partialorder %v183, 0.0
  %vm207 = vcmp.ge.f32.partialorder %v186, 0.0
  %vm208 = vcmp.ge.f32.partialorder %v188, 0.0
  %vm209 = vcmp.ge.f32.partialorder %v191, 0.0
  %vm210 = vcmp.ge.f32.partialorder %v193, 0.0
  %v211 = vmul.f32 %v156, 0.01
  %v212 = vmul.f32 %v158, 0.01
  %v213 = vmul.f32 %v161, 0.01
  %v214 = vmul.f32 %v163, 0.01
  %v215 = vmul.f32 %v166, 0.01
  %v216 = vmul.f32 %v168, 0.01
  %v217 = vmul.f32 %v171, 0.01
  %v218 = vmul.f32 %v173, 0.01
  %v219 = vmul.f32 %v176, 0.01
  %v220 = vmul.f32 %v178, 0.01
  %v221 = vmul.f32 %v181, 0.01
  %v222 = vmul.f32 %v183, 0.01
  %v223 = vmul.f32 %v186, 0.01
  %v224 = vmul.f32 %v188, 0.01
  %v225 = vmul.f32 %v191, 0.01
  %v226 = vmul.f32 %v193, 0.01
  %v227 = vsel %vm195, %v156, %v211
  %v228 = vsel %vm196, %v158, %v212
  %v229 = vsel %vm197, %v161, %v213
  %v230 = vsel %vm198, %v163, %v214
  %v231 = vsel %vm199, %v166, %v215
  %v232 = vsel %vm200, %v168, %v216
  %v233 = vsel %vm201, %v171, %v217
  %v234 = vsel %vm202, %v173, %v218
  %v235 = vsel %vm203, %v176, %v219
  %v236 = vsel %vm204, %v178, %v220
  %v237 = vsel %vm205, %v181, %v221
  %v238 = vsel %vm206, %v183, %v222
  %v239 = vsel %vm207, %v186, %v223
  %v240 = vsel %vm208, %v188, %v224
  %v241 = vsel %vm209, %v191, %v225
  %v242 = vsel %vm210, %v193, %v226
  %v243 = vpack.c.bf16 %v227, %v227
  %v244 = vpack.c.bf16 %v228, %v228
  %v245 = vpack.c.bf16 %v229, %v229
  %v246 = vpack.c.bf16 %v230, %v230
  %v247 = vpack.c.bf16 %v231, %v231
  %v248 = vpack.c.bf16 %v232, %v232
  %v249 = vpack.c.bf16 %v233, %v233
  %v250 = vpack.c.bf16 %v234, %v234
  %v251 = vpack.c.bf16 %v235, %v235
  %v252 = vpack.c.bf16 %v236, %v236
  %v253 = vpack.c.bf16 %v237, %v237
  %v254 = vpack.c.bf16 %v238, %v238
  %v255 = vpack.c.bf16 %v239, %v239
  %v256 = vpack.c.bf16 %v240, %v240
  %v257 = vpack.c.bf16 %v241, %v241
  %v258 = vpack.c.bf16 %v242, %v242
  %259 = vst [vmem:[%s3] sm:$0xf] %v243
  %260 = vst [vmem:[%s3 + $0x4] sm:$0xf] %v244
  %261 = vst [vmem:[%s3 + $0x8] sm:$0xf] %v245
  %262 = vst [vmem:[%s3 + $0xc] sm:$0xf] %v246
  %263 = vst [vmem:[%s3 + $0x10] sm:$0xf] %v247
  %264 = vst [vmem:[%s3 + $0x14] sm:$0xf] %v248
  %265 = vst [vmem:[%s3 + $0x18] sm:$0xf] %v249
  %266 = vst [vmem:[%s3 + $0x1c] sm:$0xf] %v250
  %267 = vst [vmem:[%s3 + $0x20] sm:$0xf] %v251
  %268 = vst [vmem:[%s3 + $0x24] sm:$0xf] %v252
  %269 = vst [vmem:[%s3 + $0x28] sm:$0xf] %v253
  %270 = vst [vmem:[%s3 + $0x2c] sm:$0xf] %v254
  %271 = vst [vmem:[%s3 + $0x30] sm:$0xf] %v255
  %272 = vst [vmem:[%s3 + $0x34] sm:$0xf] %v256
  %273 = vst [vmem:[%s3 + $0x38] sm:$0xf] %v257
  %274 = vst [vmem:[%s3 + $0x3c] sm:$0xf] %v258
  // Predicated region
  $region14: #{critic_forward.6} parent=0 // pred_check
    _
  $region15: #{critic_forward.6} parent=0 // pred_check_branch
    %276 = sbr.rel (0) target = $region17
  $region16: #{critic_forward.6} parent=0 // pred_region
    _
  $region17: #{critic_forward.6} parent=0 // pred_fallthru
    _
  // Predicated region
  $region18: #{critic_forward.6} parent=0 // pred_check
    _
  $region19: #{critic_forward.6} parent=0 // pred_check_branch
    %278 = sbr.rel (0) target = $region21
  $region20: #{critic_forward.6} parent=0 // pred_region
    _
  $region21: #{critic_forward.6} parent=0 // pred_fallthru
    _

// kernel: critic_forward.7
$region0: #{critic_forward.7}
  #allocation0 [shape = 'u32[]', space=smem, size = 0x4, offset = 0x4, fixed_abs, tag = 'smem constant byte address 0x4 - core index']
  #allocation1 [shape = 'u32[72,128]{1,0:T(1,128)}', space=vmem, size = 0x9000, scoped, tag = 'internal scratch']
  %s0 = inlined_call_operand.vmem [shape: bf16[32,256], index: 0, kind: input, shape index: {}]
  %s1 = inlined_call_operand.vmem [shape: bf16[256,128], index: 1, kind: input, shape index: {}]
  %s2 = inlined_call_operand.vmem [shape: f32[1,128], index: 2, kind: input, shape index: {}]
  %s3 = inlined_call_operand.vmem [shape: bf16[32,128], index: 3, kind: output, shape index: {}]
  %s4 = sld [smem:[#allocation0]]
  $region22: #{critic_forward.7} parent=0
    _
  %s6 = ssub.s32 1, %s4
  %s7 = scalar_select 0, %s6, %s4
  // Predicated region
  $region2: #{critic_forward.7} parent=0 // pred_check
    _
  $region3: #{critic_forward.7} parent=0 // pred_check_branch
    %9 = sbr.rel (0) target = $region5
  $region4: #{critic_forward.7} parent=0 // pred_region
    _
  $region5: #{critic_forward.7} parent=0 // pred_fallthru
    _
  // Predicated region
  $region6: #{critic_forward.7} parent=0 // pred_check
    _
  $region7: #{critic_forward.7} parent=0 // pred_check_branch
    %11 = sbr.rel (0) target = $region9
  $region8: #{critic_forward.7} parent=0 // pred_region
    _
  $region9: #{critic_forward.7} parent=0 // pred_fallthru
    _
  // Predicated region
  $region10: #{critic_forward.7} parent=0 // pred_check
    _
  $region11: #{critic_forward.7} parent=0 // pred_check_branch
    %13 = sbr.rel (0) target = $region13
  $region12: #{critic_forward.7} parent=0 // pred_region
    _
  $region13: #{critic_forward.7} parent=0 // pred_fallthru
    _
  %v14 = vld [vmem:[%s0] sm:$0xff]
  %v15 = vld [vmem:[%s0 + $0x8] sm:$0xff]
  %v16 = vld [vmem:[%s0 + $0x10] sm:$0xff]
  %v17 = vld [vmem:[%s0 + $0x18] sm:$0xff]
  %v18 = vld [vmem:[%s1] sm:$0xf]
  %v19 = vld [vmem:[%s1 + $0x4] sm:$0xf]
  %v20 = vld [vmem:[%s1 + $0x8] sm:$0xf]
  %v21 = vld [vmem:[%s1 + $0xc] sm:$0xf]
  %v22 = vld [vmem:[%s1 + $0x10] sm:$0xf]
  %v23 = vld [vmem:[%s1 + $0x14] sm:$0xf]
  %v24 = vld [vmem:[%s1 + $0x18] sm:$0xf]
  %v25 = vld [vmem:[%s1 + $0x1c] sm:$0xf]
  %v26 = vld [vmem:[%s1 + $0x20] sm:$0xf]
  %v27 = vld [vmem:[%s1 + $0x24] sm:$0xf]
  %v28 = vld [vmem:[%s1 + $0x28] sm:$0xf]
  %v29 = vld [vmem:[%s1 + $0x2c] sm:$0xf]
  %v30 = vld [vmem:[%s1 + $0x30] sm:$0xf]
  %v31 = vld [vmem:[%s1 + $0x34] sm:$0xf]
  %v32 = vld [vmem:[%s1 + $0x38] sm:$0xf]
  %v33 = vld [vmem:[%s1 + $0x3c] sm:$0xf]
  %v34 = vld [vmem:[%s1 + $0x40] sm:$0xf]
  %v35 = vld [vmem:[%s1 + $0x44] sm:$0xf]
  %v36 = vld [vmem:[%s1 + $0x48] sm:$0xf]
  %v37 = vld [vmem:[%s1 + $0x4c] sm:$0xf]
  %v38 = vld [vmem:[%s1 + $0x50] sm:$0xf]
  %v39 = vld [vmem:[%s1 + $0x54] sm:$0xf]
  %v40 = vld [vmem:[%s1 + $0x58] sm:$0xf]
  %v41 = vld [vmem:[%s1 + $0x5c] sm:$0xf]
  %v42 = vld [vmem:[%s1 + $0x60] sm:$0xf]
  %v43 = vld [vmem:[%s1 + $0x64] sm:$0xf]
  %v44 = vld [vmem:[%s1 + $0x68] sm:$0xf]
  %v45 = vld [vmem:[%s1 + $0x6c] sm:$0xf]
  %v46 = vld [vmem:[%s1 + $0x70] sm:$0xf]
  %v47 = vld [vmem:[%s1 + $0x74] sm:$0xf]
  %v48 = vld [vmem:[%s1 + $0x78] sm:$0xf]
  %v49 = vld [vmem:[%s1 + $0x7c] sm:$0xf]
  %v50 = vld [vmem:[%s2] sm:$0x1]
  %v52 = vperm.slane %v50, 0
  %v58 = vunpack.c.l.b16 %v14
  %v59 = vunpack.c.h.b16 %v14
  %v60 = vunpack.c.l.b16 %v15
  %v61 = vunpack.c.h.b16 %v15
  %v62 = vunpack.c.l.b16 %v16
  %v63 = vunpack.c.h.b16 %v16
  %v64 = vunpack.c.l.b16 %v17
  %v65 = vunpack.c.h.b16 %v17
  %v66 = vpack.c.b16 %v60, %v58
  %v67 = vpack.c.b16 %v61, %v59
  %v68 = vpack.c.b16 %v64, %v62
  %v69 = vpack.c.b16 %v65, %v63
  %v106 = vunpack.c.l.b16 %v18
  %v107 = vunpack.c.l.b16 %v19
  %v108 = vunpack.c.l.b16 %v20
  %v109 = vunpack.c.l.b16 %v21
  %v110 = vunpack.c.l.b16 %v22
  %v111 = vunpack.c.l.b16 %v23
  %v112 = vunpack.c.l.b16 %v24
  %v113 = vunpack.c.l.b16 %v25
  %v114 = vunpack.c.l.b16 %v26
  %v115 = vunpack.c.l.b16 %v27
  %v116 = vunpack.c.l.b16 %v28
  %v117 = vunpack.c.l.b16 %v29
  %v118 = vunpack.c.l.b16 %v30
  %v119 = vunpack.c.l.b16 %v31
  %v120 = vunpack.c.l.b16 %v32
  %v121 = vunpack.c.l.b16 %v33
  %v122 = vunpack.c.l.b16 %v34
  %v123 = vunpack.c.l.b16 %v35
  %v124 = vunpack.c.l.b16 %v36
  %v125 = vunpack.c.l.b16 %v37
  %v126 = vunpack.c.l.b16 %v38
  %v127 = vunpack.c.l.b16 %v39
  %v128 = vunpack.c.l.b16 %v40
  %v129 = vunpack.c.l.b16 %v41
  %v130 = vunpack.c.l.b16 %v42
  %v131 = vunpack.c.l.b16 %v43
  %v132 = vunpack.c.l.b16 %v44
  %v133 = vunpack.c.l.b16 %v45
  %v134 = vunpack.c.l.b16 %v46
  %v135 = vunpack.c.l.b16 %v47
  %v136 = vunpack.c.l.b16 %v48
  %v137 = vunpack.c.l.b16 %v49
  %v138 = vpack.c.b16 %v107, %v106
  %v139 = vpack.c.b16 %v109, %v108
  %v140 = vpack.c.b16 %v111, %v110
  %v141 = vpack.c.b16 %v113, %v112
  %v142 = vpack.c.b16 %v115, %v114
  %v143 = vpack.c.b16 %v117, %v116
  %v144 = vpack.c.b16 %v119, %v118
  %v145 = vpack.c.b16 %v121, %v120
  %v146 = vpack.c.b16 %v123, %v122
  %v147 = vpack.c.b16 %v125, %v124
  %v148 = vpack.c.b16 %v127, %v126
  %v149 = vpack.c.b16 %v129, %v128
  %v150 = vpack.c.b16 %v131, %v130
  %v151 = vpack.c.b16 %v133, %v132
  %v152 = vpack.c.b16 %v135, %v134
  %v153 = vpack.c.b16 %v137, %v136
  %170 = vmatpush.bf16.msra.mxu0 %v145
  %171 = vmatpush.bf16.msra.mxu0 %v144
  %172 = vmatpush.bf16.msra.mxu0 %v143
  %173 = vmatpush.bf16.msra.mxu0 %v142
  %174 = vmatpush.bf16.msra.mxu0 %v141
  %175 = vmatpush.bf16.msra.mxu0 %v140
  %176 = vmatpush.bf16.msra.mxu0 %v139
  %177 = vmatpush.bf16.msra.mxu0 %v138
  %178 = vmatmul.bf16.gmra.mxu0 %v66
  %v179 = vpop.f32.mrf.mxu0
  %v180 = vadd.f32 %v52, %v179
  %v181 = vpop.f32.mrf.mxu0
  %v182 = vadd.f32 %v52, %v181
  %183 = vmatmul.bf16.gmra.mxu0 %v68
  %v184 = vpop.f32.mrf.mxu0
  %v185 = vadd.f32 %v52, %v184
  %v186 = vpop.f32.mrf.mxu0
  %v187 = vadd.f32 %v52, %v186
  %188 = vdwg.mxu0
  %189 = vmatpush.bf16.msra.mxu0 %v153
  %190 = vmatpush.bf16.msra.mxu0 %v152
  %191 = vmatpush.bf16.msra.mxu0 %v151
  %192 = vmatpush.bf16.msra.mxu0 %v150
  %193 = vmatpush.bf16.msra.mxu0 %v149
  %194 = vmatpush.bf16.msra.mxu0 %v148
  %195 = vmatpush.bf16.msra.mxu0 %v147
  %196 = vmatpush.bf16.msra.mxu0 %v146
  %197 = vmatmul.bf16.gmra.mxu0 %v67
  %v198 = vpop.f32.mrf.mxu0
  %v199 = vadd.f32 %v180, %v198
  %v200 = vpop.f32.mrf.mxu0
  %v201 = vadd.f32 %v182, %v200
  %202 = vmatmul.bf16.gmra.mxu0 %v69
  %v203 = vpop.f32.mrf.mxu0
  %v204 = vadd.f32 %v185, %v203
  %v205 = vpop.f32.mrf.mxu0
  %v206 = vadd.f32 %v187, %v205
  %207 = vdwg.mxu0
  %vm208 = vcmp.ge.f32.partialorder %v199, 0.0
  %vm209 = vcmp.ge.f32.partialorder %v201, 0.0
  %vm210 = vcmp.ge.f32.partialorder %v204, 0.0
  %vm211 = vcmp.ge.f32.partialorder %v206, 0.0
  %v212 = vmul.f32 %v199, 0.01
  %v213 = vmul.f32 %v201, 0.01
  %v214 = vmul.f32 %v204, 0.01
  %v215 = vmul.f32 %v206, 0.01
  %v216 = vsel %vm208, %v199, %v212
  %v217 = vsel %vm209, %v201, %v213
  %v218 = vsel %vm210, %v204, %v214
  %v219 = vsel %vm211, %v206, %v215
  %v220 = vpack.c.bf16 %v216, %v216
  %v221 = vpack.c.bf16 %v217, %v217
  %v222 = vpack.c.bf16 %v218, %v218
  %v223 = vpack.c.bf16 %v219, %v219
  %224 = vst [vmem:[%s3] sm:$0xf] %v220
  %225 = vst [vmem:[%s3 + $0x4] sm:$0xf] %v221
  %226 = vst [vmem:[%s3 + $0x8] sm:$0xf] %v222
  %227 = vst [vmem:[%s3 + $0xc] sm:$0xf] %v223
  // Predicated region
  $region14: #{critic_forward.7} parent=0 // pred_check
    _
  $region15: #{critic_forward.7} parent=0 // pred_check_branch
    %229 = sbr.rel (0) target = $region17
  $region16: #{critic_forward.7} parent=0 // pred_region
    _
  $region17: #{critic_forward.7} parent=0 // pred_fallthru
    _
  // Predicated region
  $region18: #{critic_forward.7} parent=0 // pred_check
    _
  $region19: #{critic_forward.7} parent=0 // pred_check_branch
    %231 = sbr.rel (0) target = $region21
  $region20: #{critic_forward.7} parent=0 // pred_region
    _
  $region21: #{critic_forward.7} parent=0 // pred_fallthru
    _

// kernel: critic_forward.9
$region0: #{critic_forward.9}
  #allocation0 [shape = 'u32[]', space=smem, size = 0x4, offset = 0x4, fixed_abs, tag = 'smem constant byte address 0x4 - core index']
  #allocation1 [shape = 'u32[72,128]{1,0:T(1,128)}', space=vmem, size = 0x9000, scoped, tag = 'internal scratch']
  %s0 = inlined_call_operand.vmem [shape: bf16[4,128], index: 0, kind: input, shape index: {}]
  %s1 = inlined_call_operand.vmem [shape: bf16[128,128], index: 1, kind: input, shape index: {}]
  %s2 = inlined_call_operand.vmem [shape: f32[1,128], index: 2, kind: input, shape index: {}]
  %s3 = inlined_call_operand.vmem [shape: f32[4,128], index: 3, kind: output, shape index: {}]
  %s4 = sld [smem:[#allocation0]]
  $region22: #{critic_forward.9} parent=0
    _
  %s6 = ssub.s32 1, %s4
  %s7 = scalar_select 0, %s6, %s4
  // Predicated region
  $region2: #{critic_forward.9} parent=0 // pred_check
    _
  $region3: #{critic_forward.9} parent=0 // pred_check_branch
    %9 = sbr.rel (0) target = $region5
  $region4: #{critic_forward.9} parent=0 // pred_region
    _
  $region5: #{critic_forward.9} parent=0 // pred_fallthru
    _
  // Predicated region
  $region6: #{critic_forward.9} parent=0 // pred_check
    _
  $region7: #{critic_forward.9} parent=0 // pred_check_branch
    %11 = sbr.rel (0) target = $region9
  $region8: #{critic_forward.9} parent=0 // pred_region
    _
  $region9: #{critic_forward.9} parent=0 // pred_fallthru
    _
  // Predicated region
  $region10: #{critic_forward.9} parent=0 // pred_check
    _
  $region11: #{critic_forward.9} parent=0 // pred_check_branch
    %13 = sbr.rel (0) target = $region13
  $region12: #{critic_forward.9} parent=0 // pred_region
    _
  $region13: #{critic_forward.9} parent=0 // pred_fallthru
    _
  %v14 = vld [vmem:[%s0] sm:$0x3]
  %v15 = vld [vmem:[%s1] sm:$0xf]
  %v16 = vld [vmem:[%s1 + $0x4] sm:$0xf]
  %v17 = vld [vmem:[%s1 + $0x8] sm:$0xf]
  %v18 = vld [vmem:[%s1 + $0xc] sm:$0xf]
  %v19 = vld [vmem:[%s1 + $0x10] sm:$0xf]
  %v20 = vld [vmem:[%s1 + $0x14] sm:$0xf]
  %v21 = vld [vmem:[%s1 + $0x18] sm:$0xf]
  %v22 = vld [vmem:[%s1 + $0x1c] sm:$0xf]
  %v23 = vld [vmem:[%s1 + $0x20] sm:$0xf]
  %v24 = vld [vmem:[%s1 + $0x24] sm:$0xf]
  %v25 = vld [vmem:[%s1 + $0x28] sm:$0xf]
  %v26 = vld [vmem:[%s1 + $0x2c] sm:$0xf]
  %v27 = vld [vmem:[%s1 + $0x30] sm:$0xf]
  %v28 = vld [vmem:[%s1 + $0x34] sm:$0xf]
  %v29 = vld [vmem:[%s1 + $0x38] sm:$0xf]
  %v30 = vld [vmem:[%s1 + $0x3c] sm:$0xf]
  %v31 = vld [vmem:[%s2] sm:$0x1]
  %v33 = vperm.slane %v31, 0
  %v51 = vunpack.c.l.b16 %v15
  %v52 = vunpack.c.l.b16 %v16
  %v53 = vunpack.c.l.b16 %v17
  %v54 = vunpack.c.l.b16 %v18
  %v55 = vunpack.c.l.b16 %v19
  %v56 = vunpack.c.l.b16 %v20
  %v57 = vunpack.c.l.b16 %v21
  %v58 = vunpack.c.l.b16 %v22
  %v59 = vunpack.c.l.b16 %v23
  %v60 = vunpack.c.l.b16 %v24
  %v61 = vunpack.c.l.b16 %v25
  %v62 = vunpack.c.l.b16 %v26
  %v63 = vunpack.c.l.b16 %v27
  %v64 = vunpack.c.l.b16 %v28
  %v65 = vunpack.c.l.b16 %v29
  %v66 = vunpack.c.l.b16 %v30
  %v67 = vpack.c.b16 %v52, %v51
  %v68 = vpack.c.b16 %v54, %v53
  %v69 = vpack.c.b16 %v56, %v55
  %v70 = vpack.c.b16 %v58, %v57
  %v71 = vpack.c.b16 %v60, %v59
  %v72 = vpack.c.b16 %v62, %v61
  %v73 = vpack.c.b16 %v64, %v63
  %v74 = vpack.c.b16 %v66, %v65
  %83 = vmatpush.bf16.msra.mxu0 %v74
  %84 = vmatpush.bf16.msra.mxu0 %v73
  %85 = vmatpush.bf16.msra.mxu0 %v72
  %86 = vmatpush.bf16.msra.mxu0 %v71
  %87 = vmatpush.bf16.msra.mxu0 %v70
  %88 = vmatpush.bf16.msra.mxu0 %v69
  %89 = vmatpush.bf16.msra.mxu0 %v68
  %90 = vmatpush.bf16.msra.mxu0 %v67
  %91 = vmatmul.bf16.gmra.mxu0 %v14
  %v92 = vpop.f32.mrf.mxu0
  %v93 = vadd.f32 %v33, %v92
  %v94 = vpop.f32.mrf.mxu0
  %95 = vdwg.mxu0
  %96 = vst [vmem:[%s3] sm:$0xf] %v93
  // Predicated region
  $region14: #{critic_forward.9} parent=0 // pred_check
    _
  $region15: #{critic_forward.9} parent=0 // pred_check_branch
    %98 = sbr.rel (0) target = $region17
  $region16: #{critic_forward.9} parent=0 // pred_region
    _
  $region17: #{critic_forward.9} parent=0 // pred_fallthru
    _
  // Predicated region
  $region18: #{critic_forward.9} parent=0 // pred_check
    _
  $region19: #{critic_forward.9} parent=0 // pred_check_branch
    %100 = sbr.rel (0) target = $region21
  $region20: #{critic_forward.9} parent=0 // pred_region
    _
  $region21: #{critic_forward.9} parent=0 // pred_fallthru
    _

// kernel: critic_forward.8
$region0: #{critic_forward.8}
  #allocation0 [shape = 'u32[]', space=smem, size = 0x4, offset = 0x4, fixed_abs, tag = 'smem constant byte address 0x4 - core index']
  #allocation1 [shape = 'u32[72,128]{1,0:T(1,128)}', space=vmem, size = 0x9000, scoped, tag = 'internal scratch']
  %s0 = inlined_call_operand.vmem [shape: bf16[8,512], index: 0, kind: input, shape index: {}]
  %s1 = inlined_call_operand.vmem [shape: bf16[512,128], index: 1, kind: input, shape index: {}]
  %s2 = inlined_call_operand.vmem [shape: f32[1,128], index: 2, kind: input, shape index: {}]
  %s3 = inlined_call_operand.vmem [shape: bf16[8,128], index: 3, kind: output, shape index: {}]
  %s4 = sld [smem:[#allocation0]]
  $region22: #{critic_forward.8} parent=0
    _
  %s6 = ssub.s32 1, %s4
  %s7 = scalar_select 0, %s6, %s4
  // Predicated region
  $region2: #{critic_forward.8} parent=0 // pred_check
    _
  $region3: #{critic_forward.8} parent=0 // pred_check_branch
    %9 = sbr.rel (0) target = $region5
  $region4: #{critic_forward.8} parent=0 // pred_region
    _
  $region5: #{critic_forward.8} parent=0 // pred_fallthru
    _
  // Predicated region
  $region6: #{critic_forward.8} parent=0 // pred_check
    _
  $region7: #{critic_forward.8} parent=0 // pred_check_branch
    %11 = sbr.rel (0) target = $region9
  $region8: #{critic_forward.8} parent=0 // pred_region
    _
  $region9: #{critic_forward.8} parent=0 // pred_fallthru
    _
  // Predicated region
  $region10: #{critic_forward.8} parent=0 // pred_check
    _
  $region11: #{critic_forward.8} parent=0 // pred_check_branch
    %13 = sbr.rel (0) target = $region13
  $region12: #{critic_forward.8} parent=0 // pred_region
    _
  $region13: #{critic_forward.8} parent=0 // pred_fallthru
    _
  %v14 = vld [vmem:[%s0] sm:$0xff]
  %v15 = vld [vmem:[%s0 + $0x8] sm:$0xff]
  %v16 = vld [vmem:[%s1] sm:$0xf]
  %v17 = vld [vmem:[%s1 + $0x4] sm:$0xf]
  %v18 = vld [vmem:[%s1 + $0x8] sm:$0xf]
  %v19 = vld [vmem:[%s1 + $0xc] sm:$0xf]
  %v20 = vld [vmem:[%s1 + $0x10] sm:$0xf]
  %v21 = vld [vmem:[%s1 + $0x14] sm:$0xf]
  %v22 = vld [vmem:[%s1 + $0x18] sm:$0xf]
  %v23 = vld [vmem:[%s1 + $0x1c] sm:$0xf]
  %v24 = vld [vmem:[%s1 + $0x20] sm:$0xf]
  %v25 = vld [vmem:[%s1 + $0x24] sm:$0xf]
  %v26 = vld [vmem:[%s1 + $0x28] sm:$0xf]
  %v27 = vld [vmem:[%s1 + $0x2c] sm:$0xf]
  %v28 = vld [vmem:[%s1 + $0x30] sm:$0xf]
  %v29 = vld [vmem:[%s1 + $0x34] sm:$0xf]
  %v30 = vld [vmem:[%s1 + $0x38] sm:$0xf]
  %v31 = vld [vmem:[%s1 + $0x3c] sm:$0xf]
  %v32 = vld [vmem:[%s1 + $0x40] sm:$0xf]
  %v33 = vld [vmem:[%s1 + $0x44] sm:$0xf]
  %v34 = vld [vmem:[%s1 + $0x48] sm:$0xf]
  %v35 = vld [vmem:[%s1 + $0x4c] sm:$0xf]
  %v36 = vld [vmem:[%s1 + $0x50] sm:$0xf]
  %v37 = vld [vmem:[%s1 + $0x54] sm:$0xf]
  %v38 = vld [vmem:[%s1 + $0x58] sm:$0xf]
  %v39 = vld [vmem:[%s1 + $0x5c] sm:$0xf]
  %v40 = vld [vmem:[%s1 + $0x60] sm:$0xf]
  %v41 = vld [vmem:[%s1 + $0x64] sm:$0xf]
  %v42 = vld [vmem:[%s1 + $0x68] sm:$0xf]
  %v43 = vld [vmem:[%s1 + $0x6c] sm:$0xf]
  %v44 = vld [vmem:[%s1 + $0x70] sm:$0xf]
  %v45 = vld [vmem:[%s1 + $0x74] sm:$0xf]
  %v46 = vld [vmem:[%s1 + $0x78] sm:$0xf]
  %v47 = vld [vmem:[%s1 + $0x7c] sm:$0xf]
  %v48 = vld [vmem:[%s1 + $0x80] sm:$0xf]
  %v49 = vld [vmem:[%s1 + $0x84] sm:$0xf]
  %v50 = vld [vmem:[%s1 + $0x88] sm:$0xf]
  %v51 = vld [vmem:[%s1 + $0x8c] sm:$0xf]
  %v52 = vld [vmem:[%s1 + $0x90] sm:$0xf]
  %v53 = vld [vmem:[%s1 + $0x94] sm:$0xf]
  %v54 = vld [vmem:[%s1 + $0x98] sm:$0xf]
  %v55 = vld [vmem:[%s1 + $0x9c] sm:$0xf]
  %v56 = vld [vmem:[%s1 + $0xa0] sm:$0xf]
  %v57 = vld [vmem:[%s1 + $0xa4] sm:$0xf]
  %v58 = vld [vmem:[%s1 + $0xa8] sm:$0xf]
  %v59 = vld [vmem:[%s1 + $0xac] sm:$0xf]
  %v60 = vld [vmem:[%s1 + $0xb0] sm:$0xf]
  %v61 = vld [vmem:[%s1 + $0xb4] sm:$0xf]
  %v62 = vld [vmem:[%s1 + $0xb8] sm:$0xf]
  %v63 = vld [vmem:[%s1 + $0xbc] sm:$0xf]
  %v64 = vld [vmem:[%s1 + $0xc0] sm:$0xf]
  %v65 = vld [vmem:[%s1 + $0xc4] sm:$0xf]
  %v66 = vld [vmem:[%s1 + $0xc8] sm:$0xf]
  %v67 = vld [vmem:[%s1 + $0xcc] sm:$0xf]
  %v68 = vld [vmem:[%s1 + $0xd0] sm:$0xf]
  %v69 = vld [vmem:[%s1 + $0xd4] sm:$0xf]
  %v70 = vld [vmem:[%s1 + $0xd8] sm:$0xf]
  %v71 = vld [vmem:[%s1 + $0xdc] sm:$0xf]
  %v72 = vld [vmem:[%s1 + $0xe0] sm:$0xf]
  %v73 = vld [vmem:[%s1 + $0xe4] sm:$0xf]
  %v74 = vld [vmem:[%s1 + $0xe8] sm:$0xf]
  %v75 = vld [vmem:[%s1 + $0xec] sm:$0xf]
  %v76 = vld [vmem:[%s1 + $0xf0] sm:$0xf]
  %v77 = vld [vmem:[%s1 + $0xf4] sm:$0xf]
  %v78 = vld [vmem:[%s1 + $0xf8] sm:$0xf]
  %v79 = vld [vmem:[%s1 + $0xfc] sm:$0xf]
  %v80 = vld [vmem:[%s2] sm:$0x1]
  %v82 = vperm.slane %v80, 0
  %v86 = vunpack.c.l.b16 %v14
  %v87 = vunpack.c.h.b16 %v14
  %v88 = vunpack.c.l.b16 %v15
  %v89 = vunpack.c.h.b16 %v15
  %v90 = vpack.c.b16 %v86, %v86
  %v91 = vpack.c.b16 %v87, %v87
  %v92 = vpack.c.b16 %v88, %v88
  %v93 = vpack.c.b16 %v89, %v89
  %v162 = vunpack.c.l.b16 %v16
  %v163 = vunpack.c.l.b16 %v17
  %v164 = vunpack.c.l.b16 %v18
  %v165 = vunpack.c.l.b16 %v19
  %v166 = vunpack.c.l.b16 %v20
  %v167 = vunpack.c.l.b16 %v21
  %v168 = vunpack.c.l.b16 %v22
  %v169 = vunpack.c.l.b16 %v23
  %v170 = vunpack.c.l.b16 %v24
  %v171 = vunpack.c.l.b16 %v25
  %v172 = vunpack.c.l.b16 %v26
  %v173 = vunpack.c.l.b16 %v27
  %v174 = vunpack.c.l.b16 %v28
  %v175 = vunpack.c.l.b16 %v29
  %v176 = vunpack.c.l.b16 %v30
  %v177 = vunpack.c.l.b16 %v31
  %v178 = vunpack.c.l.b16 %v32
  %v179 = vunpack.c.l.b16 %v33
  %v180 = vunpack.c.l.b16 %v34
  %v181 = vunpack.c.l.b16 %v35
  %v182 = vunpack.c.l.b16 %v36
  %v183 = vunpack.c.l.b16 %v37
  %v184 = vunpack.c.l.b16 %v38
  %v185 = vunpack.c.l.b16 %v39
  %v186 = vunpack.c.l.b16 %v40
  %v187 = vunpack.c.l.b16 %v41
  %v188 = vunpack.c.l.b16 %v42
  %v189 = vunpack.c.l.b16 %v43
  %v190 = vunpack.c.l.b16 %v44
  %v191 = vunpack.c.l.b16 %v45
  %v192 = vunpack.c.l.b16 %v46
  %v193 = vunpack.c.l.b16 %v47
  %v194 = vunpack.c.l.b16 %v48
  %v195 = vunpack.c.l.b16 %v49
  %v196 = vunpack.c.l.b16 %v50
  %v197 = vunpack.c.l.b16 %v51
  %v198 = vunpack.c.l.b16 %v52
  %v199 = vunpack.c.l.b16 %v53
  %v200 = vunpack.c.l.b16 %v54
  %v201 = vunpack.c.l.b16 %v55
  %v202 = vunpack.c.l.b16 %v56
  %v203 = vunpack.c.l.b16 %v57
  %v204 = vunpack.c.l.b16 %v58
  %v205 = vunpack.c.l.b16 %v59
  %v206 = vunpack.c.l.b16 %v60
  %v207 = vunpack.c.l.b16 %v61
  %v208 = vunpack.c.l.b16 %v62
  %v209 = vunpack.c.l.b16 %v63
  %v210 = vunpack.c.l.b16 %v64
  %v211 = vunpack.c.l.b16 %v65
  %v212 = vunpack.c.l.b16 %v66
  %v213 = vunpack.c.l.b16 %v67
  %v214 = vunpack.c.l.b16 %v68
  %v215 = vunpack.c.l.b16 %v69
  %v216 = vunpack.c.l.b16 %v70
  %v217 = vunpack.c.l.b16 %v71
  %v218 = vunpack.c.l.b16 %v72
  %v219 = vunpack.c.l.b16 %v73
  %v220 = vunpack.c.l.b16 %v74
  %v221 = vunpack.c.l.b16 %v75
  %v222 = vunpack.c.l.b16 %v76
  %v223 = vunpack.c.l.b16 %v77
  %v224 = vunpack.c.l.b16 %v78
  %v225 = vunpack.c.l.b16 %v79
  %v226 = vpack.c.b16 %v163, %v162
  %v227 = vpack.c.b16 %v165, %v164
  %v228 = vpack.c.b16 %v167, %v166
  %v229 = vpack.c.b16 %v169, %v168
  %v230 = vpack.c.b16 %v171, %v170
  %v231 = vpack.c.b16 %v173, %v172
  %v232 = vpack.c.b16 %v175, %v174
  %v233 = vpack.c.b16 %v177, %v176
  %v234 = vpack.c.b16 %v179, %v178
  %v235 = vpack.c.b16 %v181, %v180
  %v236 = vpack.c.b16 %v183, %v182
  %v237 = vpack.c.b16 %v185, %v184
  %v238 = vpack.c.b16 %v187, %v186
  %v239 = vpack.c.b16 %v189, %v188
  %v240 = vpack.c.b16 %v191, %v190
  %v241 = vpack.c.b16 %v193, %v192
  %v242 = vpack.c.b16 %v195, %v194
  %v243 = vpack.c.b16 %v197, %v196
  %v244 = vpack.c.b16 %v199, %v198
  %v245 = vpack.c.b16 %v201, %v200
  %v246 = vpack.c.b16 %v203, %v202
  %v247 = vpack.c.b16 %v205, %v204
  %v248 = vpack.c.b16 %v207, %v206
  %v249 = vpack.c.b16 %v209, %v208
  %v250 = vpack.c.b16 %v211, %v210
  %v251 = vpack.c.b16 %v213, %v212
  %v252 = vpack.c.b16 %v215, %v214
  %v253 = vpack.c.b16 %v217, %v216
  %v254 = vpack.c.b16 %v219, %v218
  %v255 = vpack.c.b16 %v221, %v220
  %v256 = vpack.c.b16 %v223, %v222
  %v257 = vpack.c.b16 %v225, %v224
  %290 = vmatpush.bf16.msra.mxu0 %v233
  %291 = vmatpush.bf16.msra.mxu0 %v232
  %292 = vmatpush.bf16.msra.mxu0 %v231
  %293 = vmatpush.bf16.msra.mxu0 %v230
  %294 = vmatpush.bf16.msra.mxu0 %v229
  %295 = vmatpush.bf16.msra.mxu0 %v228
  %296 = vmatpush.bf16.msra.mxu0 %v227
  %297 = vmatpush.bf16.msra.mxu0 %v226
  %298 = vmatmul.bf16.gmra.mxu0 %v90
  %v299 = vpop.f32.mrf.mxu0
  %v300 = vadd.f32 %v82, %v299
  %v301 = vpop.f32.mrf.mxu0
  %302 = vdwg.mxu0
  %303 = vmatpush.bf16.msra.mxu0 %v241
  %304 = vmatpush.bf16.msra.mxu0 %v240
  %305 = vmatpush.bf16.msra.mxu0 %v239
  %306 = vmatpush.bf16.msra.mxu0 %v238
  %307 = vmatpush.bf16.msra.mxu0 %v237
  %308 = vmatpush.bf16.msra.mxu0 %v236
  %309 = vmatpush.bf16.msra.mxu0 %v235
  %310 = vmatpush.bf16.msra.mxu0 %v234
  %311 = vmatmul.bf16.gmra.mxu0 %v91
  %v312 = vpop.f32.mrf.mxu0
  %v313 = vadd.f32 %v300, %v312
  %v314 = vpop.f32.mrf.mxu0
  %315 = vdwg.mxu0
  %316 = vmatpush.bf16.msra.mxu0 %v249
  %317 = vmatpush.bf16.msra.mxu0 %v248
  %318 = vmatpush.bf16.msra.mxu0 %v247
  %319 = vmatpush.bf16.msra.mxu0 %v246
  %320 = vmatpush.bf16.msra.mxu0 %v245
  %321 = vmatpush.bf16.msra.mxu0 %v244
  %322 = vmatpush.bf16.msra.mxu0 %v243
  %323 = vmatpush.bf16.msra.mxu0 %v242
  %324 = vmatmul.bf16.gmra.mxu0 %v92
  %v325 = vpop.f32.mrf.mxu0
  %v326 = vadd.f32 %v313, %v325
  %v327 = vpop.f32.mrf.mxu0
  %328 = vdwg.mxu0
  %329 = vmatpush.bf16.msra.mxu0 %v257
  %330 = vmatpush.bf16.msra.mxu0 %v256
  %331 = vmatpush.bf16.msra.mxu0 %v255
  %332 = vmatpush.bf16.msra.mxu0 %v254
  %333 = vmatpush.bf16.msra.mxu0 %v253
  %334 = vmatpush.bf16.msra.mxu0 %v252
  %335 = vmatpush.bf16.msra.mxu0 %v251
  %336 = vmatpush.bf16.msra.mxu0 %v250
  %337 = vmatmul.bf16.gmra.mxu0 %v93
  %v338 = vpop.f32.mrf.mxu0
  %v339 = vadd.f32 %v326, %v338
  %v340 = vpop.f32.mrf.mxu0
  %341 = vdwg.mxu0
  %vm342 = vcmp.ge.f32.partialorder %v339, 0.0
  %v343 = vmul.f32 %v339, 0.01
  %v344 = vsel %vm342, %v339, %v343
  %v345 = vpack.c.bf16 %v344, %v344
  %346 = vst [vmem:[%s3] sm:$0xf] %v345
  // Predicated region
  $region14: #{critic_forward.8} parent=0 // pred_check
    _
  $region15: #{critic_forward.8} parent=0 // pred_check_branch
    %348 = sbr.rel (0) target = $region17
  $region16: #{critic_forward.8} parent=0 // pred_region
    _
  $region17: #{critic_forward.8} parent=0 // pred_fallthru
    _
  // Predicated region
  $region18: #{critic_forward.8} parent=0 // pred_check
    _
  $region19: #{critic_forward.8} parent=0 // pred_check_branch
    %350 = sbr.rel (0) target = $region21
  $region20: #{critic_forward.8} parent=0 // pred_region
    _
  $region21: #{critic_forward.8} parent=0 // pred_fallthru
    _

</llo_original>
